<compile_context>
chip_gen: v6e
topology: v6e:2x2x1
jax: 0.10.0
libtpu: 0.0.40
codegen_flags: <defaults>
</compile_context>

<pallas_src>
import functools
import math

import jax
import jax.numpy as jnp
from jax.experimental import pallas as pl
from jax.experimental.pallas import tpu as pltpu


def _round_up(x, m):
    return ((x + m - 1) // m) * m


def _is_v7x():
    try:
        return "v7" in jax.devices()[0].device_kind.lower()
    except Exception:
        return False


# ---------------------------------------------------------------------------
# Fused FFN kernel: one grid step processes a (bm, d_model) slab of rows.
# ---------------------------------------------------------------------------
def ffn_kernel(x_ref, w1_ref, b1_ref, w2_ref, b2_ref, o_ref, *, mxu_dtype, tk):
    x = x_ref[...]                                   # (bm, d_model)
    if mxu_dtype is not None:
        x = x.astype(mxu_dtype)                      # streamed block: cast here

    d_ff = w1_ref.shape[1]
    acc = jnp.zeros(o_ref.shape, jnp.float32)        # (bm, d_model) f32

    # Static chunking over d_ff: the (bm, tk) intermediate stays small instead
    # of materializing the full (bm, d_ff) h.  Weights are sliced statically
    # from the VMEM-resident (pre-cast) refs.
    k0 = 0
    while k0 < d_ff:
        kk = min(tk, d_ff - k0)
        w1_k = w1_ref[:, k0:k0 + kk]                 # already MXU dtype
        b1_k = b1_ref[:, k0:k0 + kk]                 # f32
        h = jnp.dot(x, w1_k, preferred_element_type=jnp.float32) + b1_k
        h = jnp.maximum(h, 0.0)                      # ReLU
        if mxu_dtype is not None:
            h = h.astype(mxu_dtype)
        w2_k = w2_ref[k0:k0 + kk, :]                 # already MXU dtype
        acc = acc + jnp.dot(h, w2_k, preferred_element_type=jnp.float32)
        k0 += kk

    o_ref[...] = (acc + b2_ref[...]).astype(o_ref.dtype)


# ---------------------------------------------------------------------------
# Wrapper: flatten leading dims -> row-blocked grid -> un-flatten.
# ---------------------------------------------------------------------------
def position_wise_ffn(x, w1, b1, w2, b2, *, block_m=1024, block_k=512,
                      mxu_dtype=jnp.bfloat16,
                      vmem_budget_bytes=24 * 1024 * 1024):
    """x: (..., d_model); w1: (d_model, d_ff); b1: (1, d_ff);
    w2: (d_ff, d_model); b2: (1, d_model).  Returns same shape/dtype as x."""
    orig_shape = x.shape
    d_model, d_ff = w1.shape
    assert orig_shape[-1] == d_model
    assert w2.shape == (d_ff, d_model)
    assert b1.shape == (1, d_ff) and b2.shape == (1, d_model)

    M = math.prod(orig_shape[:-1])
    x2 = x.reshape(M, d_model)

    # Weights are VMEM-resident across all grid steps: cast them to the MXU
    # operand dtype ONCE here (halves weight HBM traffic / VMEM and removes
    # the per-step in-kernel cast).  Biases stay f32 (added to f32 acc).
    if mxu_dtype is not None:
        w1 = w1.astype(mxu_dtype)
        w2 = w2.astype(mxu_dtype)
    w_isz = jnp.dtype(w1.dtype).itemsize
    x_isz = jnp.dtype(x.dtype).itemsize

    tk = min(d_ff, max(128, block_k))

    # --- Row-block sizing from the VMEM budget ------------------------------
    # Resident: weights + biases (double-buffered by the pipeline by default).
    weight_bytes = 2 * ((d_model * d_ff + d_ff * d_model) * w_isz
                        + (d_ff + d_model) * 4)
    # Per-row: x block + out block (double-buffered), f32 acc, (·, tk) h chunk
    # in f32 + MXU dtype, cast copy of the x row.
    per_row = (2 * d_model * x_isz + 2 * d_model * x_isz + d_model * 4
               + tk * (4 + w_isz) + d_model * w_isz)
    avail = max(vmem_budget_bytes - weight_bytes, 1 << 20)
    bm_cap = max(int(avail // per_row), 128)

    sub = 16 if mxu_dtype is not None else 8
    if M >= 128:
        bm = min(_round_up(min(bm_cap, block_m), 128), _round_up(M, 128))
    else:
        bm = _round_up(M, sub)

    # v7x only (2 TensorCores): split a single big step into >= 2 parallel
    # steps, but never below 256 rows per step.
    if _is_v7x() and M >= 512 and pl.cdiv(M, bm) < 2:
        bm = max(256, _round_up(pl.cdiv(M, 2), 128))

    grid = (pl.cdiv(M, bm),)

    est_vmem = weight_bytes + bm * per_row + (4 << 20)
    vmem_limit = int(min(max(est_vmem, 32 << 20), 48 << 20))

    out = pl.pallas_call(
        functools.partial(ffn_kernel, mxu_dtype=mxu_dtype, tk=tk),
        out_shape=jax.ShapeDtypeStruct((M, d_model), x.dtype),
        grid=grid,
        in_specs=[
            pl.BlockSpec((bm, d_model), lambda i: (i, 0)),     # x rows (streamed)
            pl.BlockSpec((d_model, d_ff), lambda i: (0, 0)),   # W1 (resident)
            pl.BlockSpec((1, d_ff), lambda i: (0, 0)),         # b1
            pl.BlockSpec((d_ff, d_model), lambda i: (0, 0)),   # W2 (resident)
            pl.BlockSpec((1, d_model), lambda i: (0, 0)),      # b2
        ],
        out_specs=pl.BlockSpec((bm, d_model), lambda i: (i, 0)),
        compiler_params=pltpu.CompilerParams(
            dimension_semantics=("parallel",),
            vmem_limit_bytes=vmem_limit),
    )(x2, w1, b1, w2, b2)

    return out.reshape(orig_shape)


# ---------------------------------------------------------------------------
# Pure-JAX reference (same math) for correctness checks.
# ---------------------------------------------------------------------------
def ffn_ref(x, w1, b1, w2, b2, mxu_dtype=None):
    if mxu_dtype is not None:
        x = x.astype(mxu_dtype)
        w1 = w1.astype(mxu_dtype)
        w2 = w2.astype(mxu_dtype)
    h = jnp.dot(x, w1, preferred_element_type=jnp.float32) + b1
    h = jnp.maximum(h, 0.0)
    if mxu_dtype is not None:
        h = h.astype(mxu_dtype)
    return jnp.dot(h, w2, preferred_element_type=jnp.float32) + b2


if __name__ == "__main__":
    key = jax.random.PRNGKey(0)
    kx, k1, kb1, k2, kb2 = jax.random.split(key, 5)

    # Small shapes consistent with the module; d_model on lanes (lane-dense
    # stores); B*T = 256 rows -> a single 256-row block on v5e/v6e.
    B, T, d_model, d_ff = 2, 128, 128, 512

    x = jax.random.normal(kx, (B, T, d_model), jnp.float32)
    # PyTorch nn.Linear stores weight as (out, in) and computes x @ W^T + b;
    # we hold the pre-transposed (in, out) layout — same forward semantics.
    w1 = jax.random.normal(k1, (d_model, d_ff), jnp.float32) / math.sqrt(d_model)
    b1 = 0.01 * jax.random.normal(kb1, (1, d_ff), jnp.float32)
    w2 = jax.random.normal(k2, (d_ff, d_model), jnp.float32) / math.sqrt(d_ff)
    b2 = 0.01 * jax.random.normal(kb2, (1, d_model), jnp.float32)

    # 1) Exact (f32 MXU operand) path: tight check against the f32 reference.
    fn_f32 = jax.jit(functools.partial(position_wise_ffn, mxu_dtype=None))
    out_f32 = jax.block_until_ready(fn_f32(x, w1, b1, w2, b2))
    ref_f32 = ffn_ref(x, w1, b1, w2, b2)
    assert out_f32.shape == x.shape, out_f32.shape
    err_f32 = float(jnp.max(jnp.abs(out_f32 - ref_f32)))
    assert err_f32 < 1e-3, f"f32 path mismatch vs JAX reference: {err_f32}"

    # 2) Default (bf16 MXU operand, f32 accumulation) path: compare against a
    #    reference built with the same bf16-cast operands.
    fn_bf16 = jax.jit(position_wise_ffn)
    out_bf16 = jax.block_until_ready(fn_bf16(x, w1, b1, w2, b2))
    ref_bf16 = ffn_ref(x, w1, b1, w2, b2, mxu_dtype=jnp.bfloat16)
    assert out_bf16.shape == x.shape, out_bf16.shape
    err_bf16 = float(jnp.max(jnp.abs(out_bf16 - ref_bf16)))
    assert err_bf16 < 2e-2, f"bf16 path mismatch vs bf16-operand ref: {err_bf16}"

    print("KERNEL_OK")
</pallas_src>

<mosaic_0001>
module attributes {stable_mosaic.version = 11 : i64} {
  func.func @ffn_kernel(%arg0: i32, %arg1: memref<256x128xf32, #tpu.memory_space<vmem>>, %arg2: memref<128x512xf32, #tpu.memory_space<vmem>>, %arg3: memref<1x512xf32, #tpu.memory_space<vmem>>, %arg4: memref<512x128xf32, #tpu.memory_space<vmem>>, %arg5: memref<1x128xf32, #tpu.memory_space<vmem>>, %arg6: memref<256x128xf32, #tpu.memory_space<vmem>>) attributes {dimension_semantics = [#tpu.dimension_semantics<parallel>], iteration_bounds = array<i64: 1>, scalar_prefetch = 0 : i64, scratch_operands = 0 : i64, tpu.core_type = #tpu.core_type<tc>, window_params = [{transform_indices = @transform_0, window_bounds = array<i64: 256, 128>}, {pipeline_mode = #tpu.pipeline_mode<synchronous>, transform_indices = @transform_1, window_bounds = array<i64: 128, 512>}, {pipeline_mode = #tpu.pipeline_mode<synchronous>, transform_indices = @transform_2, window_bounds = array<i64: 1, 512>}, {pipeline_mode = #tpu.pipeline_mode<synchronous>, transform_indices = @transform_3, window_bounds = array<i64: 512, 128>}, {pipeline_mode = #tpu.pipeline_mode<synchronous>, transform_indices = @transform_4, window_bounds = array<i64: 1, 128>}, {transform_indices = @transform_5, window_bounds = array<i64: 256, 128>}]} {
    %c0 = arith.constant 0 : index
    %c0_0 = arith.constant 0 : index
    %0 = vector.load %arg1[%c0, %c0_0] : memref<256x128xf32, #tpu.memory_space<vmem>>, vector<256x128xf32>
    %cst = arith.constant 0.000000e+00 : f32
    %1 = vector.broadcast %cst : f32 to vector<256x128xf32>
    %c0_1 = arith.constant 0 : index
    %c0_2 = arith.constant 0 : index
    %2 = vector.load %arg2[%c0_1, %c0_2] : memref<128x512xf32, #tpu.memory_space<vmem>>, vector<128x512xf32>
    %c0_3 = arith.constant 0 : index
    %c0_4 = arith.constant 0 : index
    %3 = vector.load %arg3[%c0_3, %c0_4] : memref<1x512xf32, #tpu.memory_space<vmem>>, vector<1x512xf32>
    %cst_5 = arith.constant dense<0.000000e+00> : vector<256x512xf32>
    %4 = tpu.matmul %0, %2, %cst_5 {dimension_numbers = #tpu.dot_dimension_numbers<[1], [0], [0], [1], [0, 0, 1, 1], [], []>} : vector<256x128xf32>, vector<128x512xf32>, vector<256x512xf32> -> vector<256x512xf32>
    %5 = vector.broadcast %3 : vector<1x512xf32> to vector<256x512xf32>
    %6 = arith.addf %4, %5 : vector<256x512xf32>
    %cst_6 = arith.constant 0.000000e+00 : f32
    %7 = vector.broadcast %cst_6 : f32 to vector<256x512xf32>
    %8 = arith.maximumf %6, %7 : vector<256x512xf32>
    %c0_7 = arith.constant 0 : index
    %c0_8 = arith.constant 0 : index
    %9 = vector.load %arg4[%c0_7, %c0_8] : memref<512x128xf32, #tpu.memory_space<vmem>>, vector<512x128xf32>
    %cst_9 = arith.constant dense<0.000000e+00> : vector<256x128xf32>
    %10 = tpu.matmul %8, %9, %cst_9 {dimension_numbers = #tpu.dot_dimension_numbers<[1], [0], [0], [1], [0, 0, 1, 1], [], []>} : vector<256x512xf32>, vector<512x128xf32>, vector<256x128xf32> -> vector<256x128xf32>
    %11 = arith.addf %1, %10 : vector<256x128xf32>
    %c0_10 = arith.constant 0 : index
    %c0_11 = arith.constant 0 : index
    %12 = vector.load %arg5[%c0_10, %c0_11] : memref<1x128xf32, #tpu.memory_space<vmem>>, vector<1x128xf32>
    %13 = vector.broadcast %12 : vector<1x128xf32> to vector<256x128xf32>
    %14 = arith.addf %11, %13 : vector<256x128xf32>
    %c0_12 = arith.constant 0 : index
    %c0_13 = arith.constant 0 : index
    %15 = vector.load %arg6[%c0_12, %c0_13] : memref<256x128xf32, #tpu.memory_space<vmem>>, vector<256x128xf32>
    tpu.vector_store %arg6[%c0_12, %c0_13], %14 {strides = array<i32>} : memref<256x128xf32, #tpu.memory_space<vmem>>, vector<256x128xf32>,
    return
  }
  func.func @transform_0(%arg0: i32) -> (i32, i32) {
    %c0_i32 = arith.constant 0 : i32
    %c0_i32_0 = arith.constant 0 : i32
    return %arg0, %c0_i32 : i32, i32
  }
  func.func @transform_1(%arg0: i32) -> (i32, i32) {
    %c0_i32 = arith.constant 0 : i32
    %c0_i32_0 = arith.constant 0 : i32
    %c0_i32_1 = arith.constant 0 : i32
    return %c0_i32, %c0_i32_0 : i32, i32
  }
  func.func @transform_2(%arg0: i32) -> (i32, i32) {
    %c0_i32 = arith.constant 0 : i32
    %c0_i32_0 = arith.constant 0 : i32
    %c0_i32_1 = arith.constant 0 : i32
    return %c0_i32, %c0_i32_0 : i32, i32
  }
  func.func @transform_3(%arg0: i32) -> (i32, i32) {
    %c0_i32 = arith.constant 0 : i32
    %c0_i32_0 = arith.constant 0 : i32
    %c0_i32_1 = arith.constant 0 : i32
    return %c0_i32, %c0_i32_0 : i32, i32
  }
  func.func @transform_4(%arg0: i32) -> (i32, i32) {
    %c0_i32 = arith.constant 0 : i32
    %c0_i32_0 = arith.constant 0 : i32
    %c0_i32_1 = arith.constant 0 : i32
    return %c0_i32, %c0_i32_0 : i32, i32
  }
  func.func @transform_5(%arg0: i32) -> (i32, i32) {
    %c0_i32 = arith.constant 0 : i32
    %c0_i32_0 = arith.constant 0 : i32
    return %arg0, %c0_i32 : i32, i32
  }
}

</mosaic_0001>

<llo_original>
// kernel: position_wise_ffn.1
$region0: #{position_wise_ffn.1}
  #allocation0 [shape = 'u32[]', space=smem, size = 0x4, offset = 0x4, fixed_abs, tag = 'smem constant byte address 0x4 - core index']
  #allocation1 [shape = 'u32[144,128]{1,0:T(1,128)}', space=vmem, size = 0x12000, scoped, tag = 'internal scratch']
  %s0 = inlined_call_operand.hbm [shape: f32[256,128], index: 0, kind: input, shape index: {}]
  %s1 = inlined_call_operand.hbm [shape: f32[128,512], index: 1, kind: input, shape index: {}]
  %s2 = inlined_call_operand.vmem [shape: f32[1,512], index: 2, kind: input, shape index: {}]
  %s3 = inlined_call_operand.hbm [shape: f32[512,128], index: 3, kind: input, shape index: {}]
  %s4 = inlined_call_operand.vmem [shape: f32[1,128], index: 4, kind: input, shape index: {}]
  %s5 = inlined_call_operand.hbm [shape: f32[256,128], index: 5, kind: output, shape index: {}]
  %s6 = sld [smem:[#allocation0]]
  $region42: #{position_wise_ffn.1} parent=0
    _
  %s8 = ssub.s32 1, %s6
  %s9 = scalar_select 0, %s8, %s6
  $region1: #{position_wise_ffn.1} parent=0
    #allocation2 [shape = 'u8[131072]{0}', space=vmem, size = 0x20000, scoped, tag = 'input window, operand 0, single buffered']
    #allocation3 [shape = 's32[1]{0}', space=sflag, size = 0x4, scoped, tag = 'scoped memory for position_wise_ffn.1']
    #allocation4 [shape = 's32[1]{0}', space=sflag, size = 0x4, scoped, tag = 'scoped memory for position_wise_ffn.1']
    #allocation5 [shape = 'u8[262144]{0}', space=vmem, size = 0x40000, scoped, tag = 'input window, operand 1, single buffered']
    #allocation6 [shape = 's32[1]{0}', space=sflag, size = 0x4, scoped, tag = 'scoped memory for position_wise_ffn.1']
    #allocation7 [shape = 'u8[262144]{0}', space=vmem, size = 0x40000, scoped, tag = 'input window, operand 3, single buffered']
    #allocation8 [shape = 'u8[131072]{0}', space=vmem, size = 0x20000, scoped, tag = 'output window, operand 0, single buffered']
    %10 = vsyncpa [#allocation3], 0
    %11 = vsyncpa [#allocation6], 0
    %12 = vsyncpa [#allocation4], 0
    // Predicated region
    $region2: #{position_wise_ffn.1} parent=1 // pred_check
      _
    $region3: #{position_wise_ffn.1} parent=1 // pred_check_branch
      %14 = sbr.rel (0) target = $region5
    $region4: #{position_wise_ffn.1} parent=1 // pred_region
      %s16 = ssub.s32 4096, 4096
      %17 = vsyncadd [#allocation3], %s16
      %s18 = sshll.u32 [#allocation2], 4
      %s19 = int_to_ptr.vmem [resolvable:$true] %s18
      %24 = dma.hbm_to_vmem [thread:$0]  %s0, 4096, %s19, [#allocation3], 128, 128, 8
    $region5: #{position_wise_ffn.1} parent=1 // pred_fallthru
      _
    // Predicated region
    $region6: #{position_wise_ffn.1} parent=1 // pred_check
      _
    $region7: #{position_wise_ffn.1} parent=1 // pred_check_branch
      %26 = sbr.rel (0) target = $region9
    $region8: #{position_wise_ffn.1} parent=1 // pred_region
      %s28 = ssub.s32 8192, 8192
      %29 = vsyncadd [#allocation6], %s28
      %s30 = sshll.u32 [#allocation5], 4
      %s31 = int_to_ptr.vmem [resolvable:$true] %s30
      %36 = dma.hbm_to_vmem [thread:$0]  %s1, 8192, %s31, [#allocation6], 512, 512, 32
    $region9: #{position_wise_ffn.1} parent=1 // pred_fallthru
      _
    // Predicated region
    $region10: #{position_wise_ffn.1} parent=1 // pred_check
      _
    $region11: #{position_wise_ffn.1} parent=1 // pred_check_branch
      %38 = sbr.rel (0) target = $region13
    $region12: #{position_wise_ffn.1} parent=1 // pred_region
      _
    $region13: #{position_wise_ffn.1} parent=1 // pred_fallthru
      _
    // Predicated region
    $region14: #{position_wise_ffn.1} parent=1 // pred_check
      _
    $region15: #{position_wise_ffn.1} parent=1 // pred_check_branch
      %40 = sbr.rel (0) target = $region17
    $region16: #{position_wise_ffn.1} parent=1 // pred_region
      %s42 = ssub.s32 8192, 8192
      %43 = vsyncadd [#allocation6], %s42
      %s44 = sshll.u32 [#allocation7], 4
      %s45 = int_to_ptr.vmem [resolvable:$true] %s44
      %50 = dma.hbm_to_vmem [thread:$0]  %s3, 8192, %s45, [#allocation6], 128, 128, 8
    $region17: #{position_wise_ffn.1} parent=1 // pred_fallthru
      _
    // Predicated region
    $region18: #{position_wise_ffn.1} parent=1 // pred_check
      _
    $region19: #{position_wise_ffn.1} parent=1 // pred_check_branch
      %52 = sbr.rel (0) target = $region21
    $region20: #{position_wise_ffn.1} parent=1 // pred_region
      _
    $region21: #{position_wise_ffn.1} parent=1 // pred_fallthru
      _
    // Predicated region
    $region22: #{position_wise_ffn.1} parent=1 // pred_check
      _
    $region23: #{position_wise_ffn.1} parent=1 // pred_check_branch
      %54 = sbr.rel (0) target = $region25
    $region24: #{position_wise_ffn.1} parent=1 // pred_region
      %55 = dma.done [#allocation3], 4096
    $region25: #{position_wise_ffn.1} parent=1 // pred_fallthru
      _
    // Predicated region
    $region26: #{position_wise_ffn.1} parent=1 // pred_check
      _
    $region27: #{position_wise_ffn.1} parent=1 // pred_check_branch
      %57 = sbr.rel (0) target = $region29
    $region28: #{position_wise_ffn.1} parent=1 // pred_region
      %58 = dma.done [#allocation6], 8192
    $region29: #{position_wise_ffn.1} parent=1 // pred_fallthru
      _
    // Predicated region
    $region30: #{position_wise_ffn.1} parent=1 // pred_check
      _
    $region31: #{position_wise_ffn.1} parent=1 // pred_check_branch
      %60 = sbr.rel (0) target = $region33
    $region32: #{position_wise_ffn.1} parent=1 // pred_region
      %61 = dma.done [#allocation6], 8192
    $region33: #{position_wise_ffn.1} parent=1 // pred_fallthru
      _
    %v62 = vld [vmem:[#allocation2] sm:$0xff]
    %v63 = vld [vmem:[#allocation2 + $0x8] sm:$0xff]
    %v64 = vld [vmem:[#allocation2 + $0x10] sm:$0xff]
    %v65 = vld [vmem:[#allocation2 + $0x18] sm:$0xff]
    %v66 = vld [vmem:[#allocation2 + $0x20] sm:$0xff]
    %v67 = vld [vmem:[#allocation2 + $0x28] sm:$0xff]
    %v68 = vld [vmem:[#allocation2 + $0x30] sm:$0xff]
    %v69 = vld [vmem:[#allocation2 + $0x38] sm:$0xff]
    %v70 = vld [vmem:[#allocation2 + $0x40] sm:$0xff]
    %v71 = vld [vmem:[#allocation2 + $0x48] sm:$0xff]
    %v72 = vld [vmem:[#allocation2 + $0x50] sm:$0xff]
    %v73 = vld [vmem:[#allocation2 + $0x58] sm:$0xff]
    %v74 = vld [vmem:[#allocation2 + $0x60] sm:$0xff]
    %v75 = vld [vmem:[#allocation2 + $0x68] sm:$0xff]
    %v76 = vld [vmem:[#allocation2 + $0x70] sm:$0xff]
    %v77 = vld [vmem:[#allocation2 + $0x78] sm:$0xff]
    %v78 = vld [vmem:[#allocation2 + $0x80] sm:$0xff]
    %v79 = vld [vmem:[#allocation2 + $0x88] sm:$0xff]
    %v80 = vld [vmem:[#allocation2 + $0x90] sm:$0xff]
    %v81 = vld [vmem:[#allocation2 + $0x98] sm:$0xff]
    %v82 = vld [vmem:[#allocation2 + $0xa0] sm:$0xff]
    %v83 = vld [vmem:[#allocation2 + $0xa8] sm:$0xff]
    %v84 = vld [vmem:[#allocation2 + $0xb0] sm:$0xff]
    %v85 = vld [vmem:[#allocation2 + $0xb8] sm:$0xff]
    %v86 = vld [vmem:[#allocation2 + $0xc0] sm:$0xff]
    %v87 = vld [vmem:[#allocation2 + $0xc8] sm:$0xff]
    %v88 = vld [vmem:[#allocation2 + $0xd0] sm:$0xff]
    %v89 = vld [vmem:[#allocation2 + $0xd8] sm:$0xff]
    %v90 = vld [vmem:[#allocation2 + $0xe0] sm:$0xff]
    %v91 = vld [vmem:[#allocation2 + $0xe8] sm:$0xff]
    %v92 = vld [vmem:[#allocation2 + $0xf0] sm:$0xff]
    %v93 = vld [vmem:[#allocation2 + $0xf8] sm:$0xff]
    %v94 = vld [vmem:[#allocation5] sm:$0xff]
    %v95 = vld [vmem:[#allocation5 + $0x8] sm:$0xff]
    %v96 = vld [vmem:[#allocation5 + $0x10] sm:$0xff]
    %v97 = vld [vmem:[#allocation5 + $0x18] sm:$0xff]
    %v98 = vld [vmem:[#allocation5 + $0x20] sm:$0xff]
    %v99 = vld [vmem:[#allocation5 + $0x28] sm:$0xff]
    %v100 = vld [vmem:[#allocation5 + $0x30] sm:$0xff]
    %v101 = vld [vmem:[#allocation5 + $0x38] sm:$0xff]
    %v102 = vld [vmem:[#allocation5 + $0x40] sm:$0xff]
    %v103 = vld [vmem:[#allocation5 + $0x48] sm:$0xff]
    %v104 = vld [vmem:[#allocation5 + $0x50] sm:$0xff]
    %v105 = vld [vmem:[#allocation5 + $0x58] sm:$0xff]
    %v106 = vld [vmem:[#allocation5 + $0x60] sm:$0xff]
    %v107 = vld [vmem:[#allocation5 + $0x68] sm:$0xff]
    %v108 = vld [vmem:[#allocation5 + $0x70] sm:$0xff]
    %v109 = vld [vmem:[#allocation5 + $0x78] sm:$0xff]
    %v110 = vld [vmem:[#allocation5 + $0x80] sm:$0xff]
    %v111 = vld [vmem:[#allocation5 + $0x88] sm:$0xff]
    %v112 = vld [vmem:[#allocation5 + $0x90] sm:$0xff]
    %v113 = vld [vmem:[#allocation5 + $0x98] sm:$0xff]
    %v114 = vld [vmem:[#allocation5 + $0xa0] sm:$0xff]
    %v115 = vld [vmem:[#allocation5 + $0xa8] sm:$0xff]
    %v116 = vld [vmem:[#allocation5 + $0xb0] sm:$0xff]
    %v117 = vld [vmem:[#allocation5 + $0xb8] sm:$0xff]
    %v118 = vld [vmem:[#allocation5 + $0xc0] sm:$0xff]
    %v119 = vld [vmem:[#allocation5 + $0xc8] sm:$0xff]
    %v120 = vld [vmem:[#allocation5 + $0xd0] sm:$0xff]
    %v121 = vld [vmem:[#allocation5 + $0xd8] sm:$0xff]
    %v122 = vld [vmem:[#allocation5 + $0xe0] sm:$0xff]
    %v123 = vld [vmem:[#allocation5 + $0xe8] sm:$0xff]
    %v124 = vld [vmem:[#allocation5 + $0xf0] sm:$0xff]
    %v125 = vld [vmem:[#allocation5 + $0xf8] sm:$0xff]
    %v126 = vld [vmem:[#allocation5 + $0x100] sm:$0xff]
    %v127 = vld [vmem:[#allocation5 + $0x108] sm:$0xff]
    %v128 = vld [vmem:[#allocation5 + $0x110] sm:$0xff]
    %v129 = vld [vmem:[#allocation5 + $0x118] sm:$0xff]
    %v130 = vld [vmem:[#allocation5 + $0x120] sm:$0xff]
    %v131 = vld [vmem:[#allocation5 + $0x128] sm:$0xff]
    %v132 = vld [vmem:[#allocation5 + $0x130] sm:$0xff]
    %v133 = vld [vmem:[#allocation5 + $0x138] sm:$0xff]
    %v134 = vld [vmem:[#allocation5 + $0x140] sm:$0xff]
    %v135 = vld [vmem:[#allocation5 + $0x148] sm:$0xff]
    %v136 = vld [vmem:[#allocation5 + $0x150] sm:$0xff]
    %v137 = vld [vmem:[#allocation5 + $0x158] sm:$0xff]
    %v138 = vld [vmem:[#allocation5 + $0x160] sm:$0xff]
    %v139 = vld [vmem:[#allocation5 + $0x168] sm:$0xff]
    %v140 = vld [vmem:[#allocation5 + $0x170] sm:$0xff]
    %v141 = vld [vmem:[#allocation5 + $0x178] sm:$0xff]
    %v142 = vld [vmem:[#allocation5 + $0x180] sm:$0xff]
    %v143 = vld [vmem:[#allocation5 + $0x188] sm:$0xff]
    %v144 = vld [vmem:[#allocation5 + $0x190] sm:$0xff]
    %v145 = vld [vmem:[#allocation5 + $0x198] sm:$0xff]
    %v146 = vld [vmem:[#allocation5 + $0x1a0] sm:$0xff]
    %v147 = vld [vmem:[#allocation5 + $0x1a8] sm:$0xff]
    %v148 = vld [vmem:[#allocation5 + $0x1b0] sm:$0xff]
    %v149 = vld [vmem:[#allocation5 + $0x1b8] sm:$0xff]
    %v150 = vld [vmem:[#allocation5 + $0x1c0] sm:$0xff]
    %v151 = vld [vmem:[#allocation5 + $0x1c8] sm:$0xff]
    %v152 = vld [vmem:[#allocation5 + $0x1d0] sm:$0xff]
    %v153 = vld [vmem:[#allocation5 + $0x1d8] sm:$0xff]
    %v154 = vld [vmem:[#allocation5 + $0x1e0] sm:$0xff]
    %v155 = vld [vmem:[#allocation5 + $0x1e8] sm:$0xff]
    %v156 = vld [vmem:[#allocation5 + $0x1f0] sm:$0xff]
    %v157 = vld [vmem:[#allocation5 + $0x1f8] sm:$0xff]
    %v158 = vld [vmem:[%s2] sm:$0xf]
    %v160 = vlaneseq
    %v161 = vshrl.u32 %v160, 7
    %v162 = vsub.s32 0, %v161
    %v163 = vrot.slane %v158, %v162
    %v164 = vlaneseq
    %v165 = vshrl.u32 %v164, 7
    %v166 = vsub.s32 1, %v165
    %v167 = vrot.slane %v158, %v166
    %v168 = vlaneseq
    %v169 = vshrl.u32 %v168, 7
    %v170 = vsub.s32 2, %v169
    %v171 = vrot.slane %v158, %v170
    %v172 = vlaneseq
    %v173 = vshrl.u32 %v172, 7
    %v174 = vsub.s32 3, %v173
    %v175 = vrot.slane %v158, %v174
    %180 = vmatprep.subr.mxu0 %v155
    %181 = vmatpush1.msra.mxu0 %v154
    %182 = vmatprep.subr.mxu0 %v151
    %183 = vmatpush1.msra.mxu0 %v150
    %184 = vmatprep.subr.mxu0 %v147
    %185 = vmatpush1.msra.mxu0 %v146
    %186 = vmatprep.subr.mxu0 %v143
    %187 = vmatpush1.msra.mxu0 %v142
    %188 = vmatprep.subr.mxu0 %v139
    %189 = vmatpush1.msra.mxu0 %v138
    %190 = vmatprep.subr.mxu0 %v135
    %191 = vmatpush1.msra.mxu0 %v134
    %192 = vmatprep.subr.mxu0 %v131
    %193 = vmatpush1.msra.mxu0 %v130
    %194 = vmatprep.subr.mxu0 %v127
    %195 = vmatpush1.msra.mxu0 %v126
    %196 = vmatprep.subr.mxu0 %v123
    %197 = vmatpush1.msra.mxu0 %v122
    %198 = vmatprep.subr.mxu0 %v119
    %199 = vmatpush1.msra.mxu0 %v118
    %200 = vmatprep.subr.mxu0 %v115
    %201 = vmatpush1.msra.mxu0 %v114
    %202 = vmatprep.subr.mxu0 %v111
    %203 = vmatpush1.msra.mxu0 %v110
    %204 = vmatprep.subr.mxu0 %v107
    %205 = vmatpush1.msra.mxu0 %v106
    %206 = vmatprep.subr.mxu0 %v103
    %207 = vmatpush1.msra.mxu0 %v102
    %208 = vmatprep.subr.mxu0 %v99
    %209 = vmatpush1.msra.mxu0 %v98
    %210 = vmatprep.subr.mxu0 %v95
    %211 = vmatpush1.msra.mxu0 %v94
    %212 = vmatprep.subr.mxu0 0.0
    %213 = vmatpush2.msra.mxu0 0.0
    %214 = vmatprep.subr.mxu0 0.0
    %215 = vmatpush2.msra.mxu0 0.0
    %216 = vmatprep.subr.mxu0 0.0
    %217 = vmatpush2.msra.mxu0 0.0
    %218 = vmatprep.subr.mxu0 0.0
    %219 = vmatpush2.msra.mxu0 0.0
    %220 = vmatprep.subr.mxu0 0.0
    %221 = vmatpush2.msra.mxu0 0.0
    %222 = vmatprep.subr.mxu0 0.0
    %223 = vmatpush2.msra.mxu0 0.0
    %224 = vmatprep.subr.mxu0 0.0
    %225 = vmatpush2.msra.mxu0 0.0
    %226 = vmatprep.subr.mxu0 0.0
    %227 = vmatpush2.msra.mxu0 0.0
    %228 = vmatprep.subr.mxu0 0.0
    %229 = vmatpush2.msra.mxu0 0.0
    %230 = vmatprep.subr.mxu0 0.0
    %231 = vmatpush2.msra.mxu0 0.0
    %232 = vmatprep.subr.mxu0 0.0
    %233 = vmatpush2.msra.mxu0 0.0
    %234 = vmatprep.subr.mxu0 0.0
    %235 = vmatpush2.msra.mxu0 0.0
    %236 = vmatprep.subr.mxu0 0.0
    %237 = vmatpush2.msra.mxu0 0.0
    %238 = vmatprep.subr.mxu0 0.0
    %239 = vmatpush2.msra.mxu0 0.0
    %240 = vmatprep.subr.mxu0 0.0
    %241 = vmatpush2.msra.mxu0 0.0
    %242 = vmatprep.subr.mxu0 0.0
    %243 = vmatpush2.msra.mxu0 0.0
    %244 = vmatprep.mubr.f32.mxu0 0.0
    %245 = vmatmul.mubr.f32.gmra.mxu0 %v62
    %v246 = vpop.f32.mrf.mxu0
    %v247 = vadd.f32 %v163, %v246
    %v248 = vpop.f32.mrf.mxu0
    %v249 = vadd.f32 %v167, %v248
    %250 = vmatprep.mubr.f32.mxu0 0.0
    %251 = vmatmul.mubr.f32.gmra.mxu0 %v63
    %v252 = vpop.f32.mrf.mxu0
    %v253 = vadd.f32 %v163, %v252
    %v254 = vpop.f32.mrf.mxu0
    %v255 = vadd.f32 %v167, %v254
    %256 = vmatprep.mubr.f32.mxu0 0.0
    %257 = vmatmul.mubr.f32.gmra.mxu0 %v64
    %v258 = vpop.f32.mrf.mxu0
    %v259 = vadd.f32 %v163, %v258
    %v260 = vpop.f32.mrf.mxu0
    %v261 = vadd.f32 %v167, %v260
    %262 = vmatprep.mubr.f32.mxu0 0.0
    %263 = vmatmul.mubr.f32.gmra.mxu0 %v65
    %v264 = vpop.f32.mrf.mxu0
    %v265 = vadd.f32 %v163, %v264
    %v266 = vpop.f32.mrf.mxu0
    %v267 = vadd.f32 %v167, %v266
    %268 = vmatprep.mubr.f32.mxu0 0.0
    %269 = vmatmul.mubr.f32.gmra.mxu0 %v66
    %v270 = vpop.f32.mrf.mxu0
    %v271 = vadd.f32 %v163, %v270
    %v272 = vpop.f32.mrf.mxu0
    %v273 = vadd.f32 %v167, %v272
    %274 = vmatprep.mubr.f32.mxu0 0.0
    %275 = vmatmul.mubr.f32.gmra.mxu0 %v67
    %v276 = vpop.f32.mrf.mxu0
    %v277 = vadd.f32 %v163, %v276
    %v278 = vpop.f32.mrf.mxu0
    %v279 = vadd.f32 %v167, %v278
    %280 = vmatprep.mubr.f32.mxu0 0.0
    %281 = vmatmul.mubr.f32.gmra.mxu0 %v68
    %v282 = vpop.f32.mrf.mxu0
    %v283 = vadd.f32 %v163, %v282
    %v284 = vpop.f32.mrf.mxu0
    %v285 = vadd.f32 %v167, %v284
    %286 = vmatprep.mubr.f32.mxu0 0.0
    %287 = vmatmul.mubr.f32.gmra.mxu0 %v69
    %v288 = vpop.f32.mrf.mxu0
    %v289 = vadd.f32 %v163, %v288
    %v290 = vpop.f32.mrf.mxu0
    %v291 = vadd.f32 %v167, %v290
    %292 = vmatprep.mubr.f32.mxu0 0.0
    %293 = vmatmul.mubr.f32.gmra.mxu0 %v70
    %v294 = vpop.f32.mrf.mxu0
    %v295 = vadd.f32 %v163, %v294
    %v296 = vpop.f32.mrf.mxu0
    %v297 = vadd.f32 %v167, %v296
    %298 = vmatprep.mubr.f32.mxu0 0.0
    %299 = vmatmul.mubr.f32.gmra.mxu0 %v71
    %v300 = vpop.f32.mrf.mxu0
    %v301 = vadd.f32 %v163, %v300
    %v302 = vpop.f32.mrf.mxu0
    %v303 = vadd.f32 %v167, %v302
    %304 = vmatprep.mubr.f32.mxu0 0.0
    %305 = vmatmul.mubr.f32.gmra.mxu0 %v72
    %v306 = vpop.f32.mrf.mxu0
    %v307 = vadd.f32 %v163, %v306
    %v308 = vpop.f32.mrf.mxu0
    %v309 = vadd.f32 %v167, %v308
    %310 = vmatprep.mubr.f32.mxu0 0.0
    %311 = vmatmul.mubr.f32.gmra.mxu0 %v73
    %v312 = vpop.f32.mrf.mxu0
    %v313 = vadd.f32 %v163, %v312
    %v314 = vpop.f32.mrf.mxu0
    %v315 = vadd.f32 %v167, %v314
    %316 = vmatprep.mubr.f32.mxu0 0.0
    %317 = vmatmul.mubr.f32.gmra.mxu0 %v74
    %v318 = vpop.f32.mrf.mxu0
    %v319 = vadd.f32 %v163, %v318
    %v320 = vpop.f32.mrf.mxu0
    %v321 = vadd.f32 %v167, %v320
    %322 = vmatprep.mubr.f32.mxu0 0.0
    %323 = vmatmul.mubr.f32.gmra.mxu0 %v75
    %v324 = vpop.f32.mrf.mxu0
    %v325 = vadd.f32 %v163, %v324
    %v326 = vpop.f32.mrf.mxu0
    %v327 = vadd.f32 %v167, %v326
    %328 = vmatprep.mubr.f32.mxu0 0.0
    %329 = vmatmul.mubr.f32.gmra.mxu0 %v76
    %v330 = vpop.f32.mrf.mxu0
    %v331 = vadd.f32 %v163, %v330
    %v332 = vpop.f32.mrf.mxu0
    %v333 = vadd.f32 %v167, %v332
    %334 = vmatprep.mubr.f32.mxu0 0.0
    %335 = vmatmul.mubr.f32.gmra.mxu0 %v77
    %v336 = vpop.f32.mrf.mxu0
    %v337 = vadd.f32 %v163, %v336
    %v338 = vpop.f32.mrf.mxu0
    %v339 = vadd.f32 %v167, %v338
    %340 = vmatprep.mubr.f32.mxu0 0.0
    %341 = vmatmul.mubr.f32.gmra.mxu0 %v78
    %v342 = vpop.f32.mrf.mxu0
    %v343 = vadd.f32 %v163, %v342
    %v344 = vpop.f32.mrf.mxu0
    %v345 = vadd.f32 %v167, %v344
    %346 = vmatprep.mubr.f32.mxu0 0.0
    %347 = vmatmul.mubr.f32.gmra.mxu0 %v79
    %v348 = vpop.f32.mrf.mxu0
    %v349 = vadd.f32 %v163, %v348
    %v350 = vpop.f32.mrf.mxu0
    %v351 = vadd.f32 %v167, %v350
    %352 = vmatprep.mubr.f32.mxu0 0.0
    %353 = vmatmul.mubr.f32.gmra.mxu0 %v80
    %v354 = vpop.f32.mrf.mxu0
    %v355 = vadd.f32 %v163, %v354
    %v356 = vpop.f32.mrf.mxu0
    %v357 = vadd.f32 %v167, %v356
    %358 = vmatprep.mubr.f32.mxu0 0.0
    %359 = vmatmul.mubr.f32.gmra.mxu0 %v81
    %v360 = vpop.f32.mrf.mxu0
    %v361 = vadd.f32 %v163, %v360
    %v362 = vpop.f32.mrf.mxu0
    %v363 = vadd.f32 %v167, %v362
    %364 = vmatprep.mubr.f32.mxu0 0.0
    %365 = vmatmul.mubr.f32.gmra.mxu0 %v82
    %v366 = vpop.f32.mrf.mxu0
    %v367 = vadd.f32 %v163, %v366
    %v368 = vpop.f32.mrf.mxu0
    %v369 = vadd.f32 %v167, %v368
    %370 = vmatprep.mubr.f32.mxu0 0.0
    %371 = vmatmul.mubr.f32.gmra.mxu0 %v83
    %v372 = vpop.f32.mrf.mxu0
    %v373 = vadd.f32 %v163, %v372
    %v374 = vpop.f32.mrf.mxu0
    %v375 = vadd.f32 %v167, %v374
    %376 = vmatprep.mubr.f32.mxu0 0.0
    %377 = vmatmul.mubr.f32.gmra.mxu0 %v84
    %v378 = vpop.f32.mrf.mxu0
    %v379 = vadd.f32 %v163, %v378
    %v380 = vpop.f32.mrf.mxu0
    %v381 = vadd.f32 %v167, %v380
    %382 = vmatprep.mubr.f32.mxu0 0.0
    %383 = vmatmul.mubr.f32.gmra.mxu0 %v85
    %v384 = vpop.f32.mrf.mxu0
    %v385 = vadd.f32 %v163, %v384
    %v386 = vpop.f32.mrf.mxu0
    %v387 = vadd.f32 %v167, %v386
    %388 = vmatprep.mubr.f32.mxu0 0.0
    %389 = vmatmul.mubr.f32.gmra.mxu0 %v86
    %v390 = vpop.f32.mrf.mxu0
    %v391 = vadd.f32 %v163, %v390
    %v392 = vpop.f32.mrf.mxu0
    %v393 = vadd.f32 %v167, %v392
    %394 = vmatprep.mubr.f32.mxu0 0.0
    %395 = vmatmul.mubr.f32.gmra.mxu0 %v87
    %v396 = vpop.f32.mrf.mxu0
    %v397 = vadd.f32 %v163, %v396
    %v398 = vpop.f32.mrf.mxu0
    %v399 = vadd.f32 %v167, %v398
    %400 = vmatprep.mubr.f32.mxu0 0.0
    %401 = vmatmul.mubr.f32.gmra.mxu0 %v88
    %v402 = vpop.f32.mrf.mxu0
    %v403 = vadd.f32 %v163, %v402
    %v404 = vpop.f32.mrf.mxu0
    %v405 = vadd.f32 %v167, %v404
    %406 = vmatprep.mubr.f32.mxu0 0.0
    %407 = vmatmul.mubr.f32.gmra.mxu0 %v89
    %v408 = vpop.f32.mrf.mxu0
    %v409 = vadd.f32 %v163, %v408
    %v410 = vpop.f32.mrf.mxu0
    %v411 = vadd.f32 %v167, %v410
    %412 = vmatprep.mubr.f32.mxu0 0.0
    %413 = vmatmul.mubr.f32.gmra.mxu0 %v90
    %v414 = vpop.f32.mrf.mxu0
    %v415 = vadd.f32 %v163, %v414
    %v416 = vpop.f32.mrf.mxu0
    %v417 = vadd.f32 %v167, %v416
    %418 = vmatprep.mubr.f32.mxu0 0.0
    %419 = vmatmul.mubr.f32.gmra.mxu0 %v91
    %v420 = vpop.f32.mrf.mxu0
    %v421 = vadd.f32 %v163, %v420
    %v422 = vpop.f32.mrf.mxu0
    %v423 = vadd.f32 %v167, %v422
    %424 = vmatprep.mubr.f32.mxu0 0.0
    %425 = vmatmul.mubr.f32.gmra.mxu0 %v92
    %v426 = vpop.f32.mrf.mxu0
    %v427 = vadd.f32 %v163, %v426
    %v428 = vpop.f32.mrf.mxu0
    %v429 = vadd.f32 %v167, %v428
    %430 = vmatprep.mubr.f32.mxu0 0.0
    %431 = vmatmul.mubr.f32.gmra.mxu0 %v93
    %v432 = vpop.f32.mrf.mxu0
    %v433 = vadd.f32 %v163, %v432
    %v434 = vpop.f32.mrf.mxu0
    %v435 = vadd.f32 %v167, %v434
    %436 = vdwg.mxu0
    %437 = vmatprep.subr.mxu0 %v157
    %438 = vmatpush1.msra.mxu0 %v156
    %439 = vmatprep.subr.mxu0 %v153
    %440 = vmatpush1.msra.mxu0 %v152
    %441 = vmatprep.subr.mxu0 %v149
    %442 = vmatpush1.msra.mxu0 %v148
    %443 = vmatprep.subr.mxu0 %v145
    %444 = vmatpush1.msra.mxu0 %v144
    %445 = vmatprep.subr.mxu0 %v141
    %446 = vmatpush1.msra.mxu0 %v140
    %447 = vmatprep.subr.mxu0 %v137
    %448 = vmatpush1.msra.mxu0 %v136
    %449 = vmatprep.subr.mxu0 %v133
    %450 = vmatpush1.msra.mxu0 %v132
    %451 = vmatprep.subr.mxu0 %v129
    %452 = vmatpush1.msra.mxu0 %v128
    %453 = vmatprep.subr.mxu0 %v125
    %454 = vmatpush1.msra.mxu0 %v124
    %455 = vmatprep.subr.mxu0 %v121
    %456 = vmatpush1.msra.mxu0 %v120
    %457 = vmatprep.subr.mxu0 %v117
    %458 = vmatpush1.msra.mxu0 %v116
    %459 = vmatprep.subr.mxu0 %v113
    %460 = vmatpush1.msra.mxu0 %v112
    %461 = vmatprep.subr.mxu0 %v109
    %462 = vmatpush1.msra.mxu0 %v108
    %463 = vmatprep.subr.mxu0 %v105
    %464 = vmatpush1.msra.mxu0 %v104
    %465 = vmatprep.subr.mxu0 %v101
    %466 = vmatpush1.msra.mxu0 %v100
    %467 = vmatprep.subr.mxu0 %v97
    %468 = vmatpush1.msra.mxu0 %v96
    %469 = vmatprep.subr.mxu0 0.0
    %470 = vmatpush2.msra.mxu0 0.0
    %471 = vmatprep.subr.mxu0 0.0
    %472 = vmatpush2.msra.mxu0 0.0
    %473 = vmatprep.subr.mxu0 0.0
    %474 = vmatpush2.msra.mxu0 0.0
    %475 = vmatprep.subr.mxu0 0.0
    %476 = vmatpush2.msra.mxu0 0.0
    %477 = vmatprep.subr.mxu0 0.0
    %478 = vmatpush2.msra.mxu0 0.0
    %479 = vmatprep.subr.mxu0 0.0
    %480 = vmatpush2.msra.mxu0 0.0
    %481 = vmatprep.subr.mxu0 0.0
    %482 = vmatpush2.msra.mxu0 0.0
    %483 = vmatprep.subr.mxu0 0.0
    %484 = vmatpush2.msra.mxu0 0.0
    %485 = vmatprep.subr.mxu0 0.0
    %486 = vmatpush2.msra.mxu0 0.0
    %487 = vmatprep.subr.mxu0 0.0
    %488 = vmatpush2.msra.mxu0 0.0
    %489 = vmatprep.subr.mxu0 0.0
    %490 = vmatpush2.msra.mxu0 0.0
    %491 = vmatprep.subr.mxu0 0.0
    %492 = vmatpush2.msra.mxu0 0.0
    %493 = vmatprep.subr.mxu0 0.0
    %494 = vmatpush2.msra.mxu0 0.0
    %495 = vmatprep.subr.mxu0 0.0
    %496 = vmatpush2.msra.mxu0 0.0
    %497 = vmatprep.subr.mxu0 0.0
    %498 = vmatpush2.msra.mxu0 0.0
    %499 = vmatprep.subr.mxu0 0.0
    %500 = vmatpush2.msra.mxu0 0.0
    %501 = vmatprep.mubr.f32.mxu0 0.0
    %502 = vmatmul.mubr.f32.gmra.mxu0 %v62
    %v503 = vpop.f32.mrf.mxu0
    %v504 = vadd.f32 %v171, %v503
    %v505 = vpop.f32.mrf.mxu0
    %v506 = vadd.f32 %v175, %v505
    %507 = vmatprep.mubr.f32.mxu0 0.0
    %508 = vmatmul.mubr.f32.gmra.mxu0 %v63
    %v509 = vpop.f32.mrf.mxu0
    %v510 = vadd.f32 %v171, %v509
    %v511 = vpop.f32.mrf.mxu0
    %v512 = vadd.f32 %v175, %v511
    %513 = vmatprep.mubr.f32.mxu0 0.0
    %514 = vmatmul.mubr.f32.gmra.mxu0 %v64
    %v515 = vpop.f32.mrf.mxu0
    %v516 = vadd.f32 %v171, %v515
    %v517 = vpop.f32.mrf.mxu0
    %v518 = vadd.f32 %v175, %v517
    %519 = vmatprep.mubr.f32.mxu0 0.0
    %520 = vmatmul.mubr.f32.gmra.mxu0 %v65
    %v521 = vpop.f32.mrf.mxu0
    %v522 = vadd.f32 %v171, %v521
    %v523 = vpop.f32.mrf.mxu0
    %v524 = vadd.f32 %v175, %v523
    %525 = vmatprep.mubr.f32.mxu0 0.0
    %526 = vmatmul.mubr.f32.gmra.mxu0 %v66
    %v527 = vpop.f32.mrf.mxu0
    %v528 = vadd.f32 %v171, %v527
    %v529 = vpop.f32.mrf.mxu0
    %v530 = vadd.f32 %v175, %v529
    %531 = vmatprep.mubr.f32.mxu0 0.0
    %532 = vmatmul.mubr.f32.gmra.mxu0 %v67
    %v533 = vpop.f32.mrf.mxu0
    %v534 = vadd.f32 %v171, %v533
    %v535 = vpop.f32.mrf.mxu0
    %v536 = vadd.f32 %v175, %v535
    %537 = vmatprep.mubr.f32.mxu0 0.0
    %538 = vmatmul.mubr.f32.gmra.mxu0 %v68
    %v539 = vpop.f32.mrf.mxu0
    %v540 = vadd.f32 %v171, %v539
    %v541 = vpop.f32.mrf.mxu0
    %v542 = vadd.f32 %v175, %v541
    %543 = vmatprep.mubr.f32.mxu0 0.0
    %544 = vmatmul.mubr.f32.gmra.mxu0 %v69
    %v545 = vpop.f32.mrf.mxu0
    %v546 = vadd.f32 %v171, %v545
    %v547 = vpop.f32.mrf.mxu0
    %v548 = vadd.f32 %v175, %v547
    %549 = vmatprep.mubr.f32.mxu0 0.0
    %550 = vmatmul.mubr.f32.gmra.mxu0 %v70
    %v551 = vpop.f32.mrf.mxu0
    %v552 = vadd.f32 %v171, %v551
    %v553 = vpop.f32.mrf.mxu0
    %v554 = vadd.f32 %v175, %v553
    %555 = vmatprep.mubr.f32.mxu0 0.0
    %556 = vmatmul.mubr.f32.gmra.mxu0 %v71
    %v557 = vpop.f32.mrf.mxu0
    %v558 = vadd.f32 %v171, %v557
    %v559 = vpop.f32.mrf.mxu0
    %v560 = vadd.f32 %v175, %v559
    %561 = vmatprep.mubr.f32.mxu0 0.0
    %562 = vmatmul.mubr.f32.gmra.mxu0 %v72
    %v563 = vpop.f32.mrf.mxu0
    %v564 = vadd.f32 %v171, %v563
    %v565 = vpop.f32.mrf.mxu0
    %v566 = vadd.f32 %v175, %v565
    %567 = vmatprep.mubr.f32.mxu0 0.0
    %568 = vmatmul.mubr.f32.gmra.mxu0 %v73
    %v569 = vpop.f32.mrf.mxu0
    %v570 = vadd.f32 %v171, %v569
    %v571 = vpop.f32.mrf.mxu0
    %v572 = vadd.f32 %v175, %v571
    %573 = vmatprep.mubr.f32.mxu0 0.0
    %574 = vmatmul.mubr.f32.gmra.mxu0 %v74
    %v575 = vpop.f32.mrf.mxu0
    %v576 = vadd.f32 %v171, %v575
    %v577 = vpop.f32.mrf.mxu0
    %v578 = vadd.f32 %v175, %v577
    %579 = vmatprep.mubr.f32.mxu0 0.0
    %580 = vmatmul.mubr.f32.gmra.mxu0 %v75
    %v581 = vpop.f32.mrf.mxu0
    %v582 = vadd.f32 %v171, %v581
    %v583 = vpop.f32.mrf.mxu0
    %v584 = vadd.f32 %v175, %v583
    %585 = vmatprep.mubr.f32.mxu0 0.0
    %586 = vmatmul.mubr.f32.gmra.mxu0 %v76
    %v587 = vpop.f32.mrf.mxu0
    %v588 = vadd.f32 %v171, %v587
    %v589 = vpop.f32.mrf.mxu0
    %v590 = vadd.f32 %v175, %v589
    %591 = vmatprep.mubr.f32.mxu0 0.0
    %592 = vmatmul.mubr.f32.gmra.mxu0 %v77
    %v593 = vpop.f32.mrf.mxu0
    %v594 = vadd.f32 %v171, %v593
    %v595 = vpop.f32.mrf.mxu0
    %v596 = vadd.f32 %v175, %v595
    %597 = vmatprep.mubr.f32.mxu0 0.0
    %598 = vmatmul.mubr.f32.gmra.mxu0 %v78
    %v599 = vpop.f32.mrf.mxu0
    %v600 = vadd.f32 %v171, %v599
    %v601 = vpop.f32.mrf.mxu0
    %v602 = vadd.f32 %v175, %v601
    %603 = vmatprep.mubr.f32.mxu0 0.0
    %604 = vmatmul.mubr.f32.gmra.mxu0 %v79
    %v605 = vpop.f32.mrf.mxu0
    %v606 = vadd.f32 %v171, %v605
    %v607 = vpop.f32.mrf.mxu0
    %v608 = vadd.f32 %v175, %v607
    %609 = vmatprep.mubr.f32.mxu0 0.0
    %610 = vmatmul.mubr.f32.gmra.mxu0 %v80
    %v611 = vpop.f32.mrf.mxu0
    %v612 = vadd.f32 %v171, %v611
    %v613 = vpop.f32.mrf.mxu0
    %v614 = vadd.f32 %v175, %v613
    %615 = vmatprep.mubr.f32.mxu0 0.0
    %616 = vmatmul.mubr.f32.gmra.mxu0 %v81
    %v617 = vpop.f32.mrf.mxu0
    %v618 = vadd.f32 %v171, %v617
    %v619 = vpop.f32.mrf.mxu0
    %v620 = vadd.f32 %v175, %v619
    %621 = vmatprep.mubr.f32.mxu0 0.0
    %622 = vmatmul.mubr.f32.gmra.mxu0 %v82
    %v623 = vpop.f32.mrf.mxu0
    %v624 = vadd.f32 %v171, %v623
    %v625 = vpop.f32.mrf.mxu0
    %v626 = vadd.f32 %v175, %v625
    %627 = vmatprep.mubr.f32.mxu0 0.0
    %628 = vmatmul.mubr.f32.gmra.mxu0 %v83
    %v629 = vpop.f32.mrf.mxu0
    %v630 = vadd.f32 %v171, %v629
    %v631 = vpop.f32.mrf.mxu0
    %v632 = vadd.f32 %v175, %v631
    %633 = vmatprep.mubr.f32.mxu0 0.0
    %634 = vmatmul.mubr.f32.gmra.mxu0 %v84
    %v635 = vpop.f32.mrf.mxu0
    %v636 = vadd.f32 %v171, %v635
    %v637 = vpop.f32.mrf.mxu0
    %v638 = vadd.f32 %v175, %v637
    %639 = vmatprep.mubr.f32.mxu0 0.0
    %640 = vmatmul.mubr.f32.gmra.mxu0 %v85
    %v641 = vpop.f32.mrf.mxu0
    %v642 = vadd.f32 %v171, %v641
    %v643 = vpop.f32.mrf.mxu0
    %v644 = vadd.f32 %v175, %v643
    %645 = vmatprep.mubr.f32.mxu0 0.0
    %646 = vmatmul.mubr.f32.gmra.mxu0 %v86
    %v647 = vpop.f32.mrf.mxu0
    %v648 = vadd.f32 %v171, %v647
    %v649 = vpop.f32.mrf.mxu0
    %v650 = vadd.f32 %v175, %v649
    %651 = vmatprep.mubr.f32.mxu0 0.0
    %652 = vmatmul.mubr.f32.gmra.mxu0 %v87
    %v653 = vpop.f32.mrf.mxu0
    %v654 = vadd.f32 %v171, %v653
    %v655 = vpop.f32.mrf.mxu0
    %v656 = vadd.f32 %v175, %v655
    %657 = vmatprep.mubr.f32.mxu0 0.0
    %658 = vmatmul.mubr.f32.gmra.mxu0 %v88
    %v659 = vpop.f32.mrf.mxu0
    %v660 = vadd.f32 %v171, %v659
    %v661 = vpop.f32.mrf.mxu0
    %v662 = vadd.f32 %v175, %v661
    %663 = vmatprep.mubr.f32.mxu0 0.0
    %664 = vmatmul.mubr.f32.gmra.mxu0 %v89
    %v665 = vpop.f32.mrf.mxu0
    %v666 = vadd.f32 %v171, %v665
    %v667 = vpop.f32.mrf.mxu0
    %v668 = vadd.f32 %v175, %v667
    %669 = vmatprep.mubr.f32.mxu0 0.0
    %670 = vmatmul.mubr.f32.gmra.mxu0 %v90
    %v671 = vpop.f32.mrf.mxu0
    %v672 = vadd.f32 %v171, %v671
    %v673 = vpop.f32.mrf.mxu0
    %v674 = vadd.f32 %v175, %v673
    %675 = vmatprep.mubr.f32.mxu0 0.0
    %676 = vmatmul.mubr.f32.gmra.mxu0 %v91
    %v677 = vpop.f32.mrf.mxu0
    %v678 = vadd.f32 %v171, %v677
    %v679 = vpop.f32.mrf.mxu0
    %v680 = vadd.f32 %v175, %v679
    %681 = vmatprep.mubr.f32.mxu0 0.0
    %682 = vmatmul.mubr.f32.gmra.mxu0 %v92
    %v683 = vpop.f32.mrf.mxu0
    %v684 = vadd.f32 %v171, %v683
    %v685 = vpop.f32.mrf.mxu0
    %v686 = vadd.f32 %v175, %v685
    %687 = vmatprep.mubr.f32.mxu0 0.0
    %688 = vmatmul.mubr.f32.gmra.mxu0 %v93
    %v689 = vpop.f32.mrf.mxu0
    %v690 = vadd.f32 %v171, %v689
    %v691 = vpop.f32.mrf.mxu0
    %v692 = vadd.f32 %v175, %v691
    %693 = vdwg.mxu0
    %v694 = vmax.f32 %v247, 0.0
    %v695 = vmax.f32 %v249, 0.0
    %v696 = vmax.f32 %v504, 0.0
    %v697 = vmax.f32 %v506, 0.0
    %v698 = vmax.f32 %v253, 0.0
    %v699 = vmax.f32 %v255, 0.0
    %v700 = vmax.f32 %v510, 0.0
    %v701 = vmax.f32 %v512, 0.0
    %v702 = vmax.f32 %v259, 0.0
    %v703 = vmax.f32 %v261, 0.0
    %v704 = vmax.f32 %v516, 0.0
    %v705 = vmax.f32 %v518, 0.0
    %v706 = vmax.f32 %v265, 0.0
    %v707 = vmax.f32 %v267, 0.0
    %v708 = vmax.f32 %v522, 0.0
    %v709 = vmax.f32 %v524, 0.0
    %v710 = vmax.f32 %v271, 0.0
    %v711 = vmax.f32 %v273, 0.0
    %v712 = vmax.f32 %v528, 0.0
    %v713 = vmax.f32 %v530, 0.0
    %v714 = vmax.f32 %v277, 0.0
    %v715 = vmax.f32 %v279, 0.0
    %v716 = vmax.f32 %v534, 0.0
    %v717 = vmax.f32 %v536, 0.0
    %v718 = vmax.f32 %v283, 0.0
    %v719 = vmax.f32 %v285, 0.0
    %v720 = vmax.f32 %v540, 0.0
    %v721 = vmax.f32 %v542, 0.0
    %v722 = vmax.f32 %v289, 0.0
    %v723 = vmax.f32 %v291, 0.0
    %v724 = vmax.f32 %v546, 0.0
    %v725 = vmax.f32 %v548, 0.0
    %v726 = vmax.f32 %v295, 0.0
    %v727 = vmax.f32 %v297, 0.0
    %v728 = vmax.f32 %v552, 0.0
    %v729 = vmax.f32 %v554, 0.0
    %v730 = vmax.f32 %v301, 0.0
    %v731 = vmax.f32 %v303, 0.0
    %v732 = vmax.f32 %v558, 0.0
    %v733 = vmax.f32 %v560, 0.0
    %v734 = vmax.f32 %v307, 0.0
    %v735 = vmax.f32 %v309, 0.0
    %v736 = vmax.f32 %v564, 0.0
    %v737 = vmax.f32 %v566, 0.0
    %v738 = vmax.f32 %v313, 0.0
    %v739 = vmax.f32 %v315, 0.0
    %v740 = vmax.f32 %v570, 0.0
    %v741 = vmax.f32 %v572, 0.0
    %v742 = vmax.f32 %v319, 0.0
    %v743 = vmax.f32 %v321, 0.0
    %v744 = vmax.f32 %v576, 0.0
    %v745 = vmax.f32 %v578, 0.0
    %v746 = vmax.f32 %v325, 0.0
    %v747 = vmax.f32 %v327, 0.0
    %v748 = vmax.f32 %v582, 0.0
    %v749 = vmax.f32 %v584, 0.0
    %v750 = vmax.f32 %v331, 0.0
    %v751 = vmax.f32 %v333, 0.0
    %v752 = vmax.f32 %v588, 0.0
    %v753 = vmax.f32 %v590, 0.0
    %v754 = vmax.f32 %v337, 0.0
    %v755 = vmax.f32 %v339, 0.0
    %v756 = vmax.f32 %v594, 0.0
    %v757 = vmax.f32 %v596, 0.0
    %v758 = vmax.f32 %v343, 0.0
    %v759 = vmax.f32 %v345, 0.0
    %v760 = vmax.f32 %v600, 0.0
    %v761 = vmax.f32 %v602, 0.0
    %v762 = vmax.f32 %v349, 0.0
    %v763 = vmax.f32 %v351, 0.0
    %v764 = vmax.f32 %v606, 0.0
    %v765 = vmax.f32 %v608, 0.0
    %v766 = vmax.f32 %v355, 0.0
    %v767 = vmax.f32 %v357, 0.0
    %v768 = vmax.f32 %v612, 0.0
    %v769 = vmax.f32 %v614, 0.0
    %v770 = vmax.f32 %v361, 0.0
    %v771 = vmax.f32 %v363, 0.0
    %v772 = vmax.f32 %v618, 0.0
    %v773 = vmax.f32 %v620, 0.0
    %v774 = vmax.f32 %v367, 0.0
    %v775 = vmax.f32 %v369, 0.0
    %v776 = vmax.f32 %v624, 0.0
    %v777 = vmax.f32 %v626, 0.0
    %v778 = vmax.f32 %v373, 0.0
    %v779 = vmax.f32 %v375, 0.0
    %v780 = vmax.f32 %v630, 0.0
    %v781 = vmax.f32 %v632, 0.0
    %v782 = vmax.f32 %v379, 0.0
    %v783 = vmax.f32 %v381, 0.0
    %v784 = vmax.f32 %v636, 0.0
    %v785 = vmax.f32 %v638, 0.0
    %v786 = vmax.f32 %v385, 0.0
    %v787 = vmax.f32 %v387, 0.0
    %v788 = vmax.f32 %v642, 0.0
    %v789 = vmax.f32 %v644, 0.0
    %v790 = vmax.f32 %v391, 0.0
    %v791 = vmax.f32 %v393, 0.0
    %v792 = vmax.f32 %v648, 0.0
    %v793 = vmax.f32 %v650, 0.0
    %v794 = vmax.f32 %v397, 0.0
    %v795 = vmax.f32 %v399, 0.0
    %v796 = vmax.f32 %v654, 0.0
    %v797 = vmax.f32 %v656, 0.0
    %v798 = vmax.f32 %v403, 0.0
    %v799 = vmax.f32 %v405, 0.0
    %v800 = vmax.f32 %v660, 0.0
    %v801 = vmax.f32 %v662, 0.0
    %v802 = vmax.f32 %v409, 0.0
    %v803 = vmax.f32 %v411, 0.0
    %v804 = vmax.f32 %v666, 0.0
    %v805 = vmax.f32 %v668, 0.0
    %v806 = vmax.f32 %v415, 0.0
    %v807 = vmax.f32 %v417, 0.0
    %v808 = vmax.f32 %v672, 0.0
    %v809 = vmax.f32 %v674, 0.0
    %v810 = vmax.f32 %v421, 0.0
    %v811 = vmax.f32 %v423, 0.0
    %v812 = vmax.f32 %v678, 0.0
    %v813 = vmax.f32 %v680, 0.0
    %v814 = vmax.f32 %v427, 0.0
    %v815 = vmax.f32 %v429, 0.0
    %v816 = vmax.f32 %v684, 0.0
    %v817 = vmax.f32 %v686, 0.0
    %v818 = vmax.f32 %v433, 0.0
    %v819 = vmax.f32 %v435, 0.0
    %v820 = vmax.f32 %v690, 0.0
    %v821 = vmax.f32 %v692, 0.0
    %v822 = vld [vmem:[#allocation7] sm:$0xff]
    %v823 = vld [vmem:[#allocation7 + $0x8] sm:$0xff]
    %v824 = vld [vmem:[#allocation7 + $0x10] sm:$0xff]
    %v825 = vld [vmem:[#allocation7 + $0x18] sm:$0xff]
    %v826 = vld [vmem:[#allocation7 + $0x20] sm:$0xff]
    %v827 = vld [vmem:[#allocation7 + $0x28] sm:$0xff]
    %v828 = vld [vmem:[#allocation7 + $0x30] sm:$0xff]
    %v829 = vld [vmem:[#allocation7 + $0x38] sm:$0xff]
    %v830 = vld [vmem:[#allocation7 + $0x40] sm:$0xff]
    %v831 = vld [vmem:[#allocation7 + $0x48] sm:$0xff]
    %v832 = vld [vmem:[#allocation7 + $0x50] sm:$0xff]
    %v833 = vld [vmem:[#allocation7 + $0x58] sm:$0xff]
    %v834 = vld [vmem:[#allocation7 + $0x60] sm:$0xff]
    %v835 = vld [vmem:[#allocation7 + $0x68] sm:$0xff]
    %v836 = vld [vmem:[#allocation7 + $0x70] sm:$0xff]
    %v837 = vld [vmem:[#allocation7 + $0x78] sm:$0xff]
    %v838 = vld [vmem:[#allocation7 + $0x80] sm:$0xff]
    %v839 = vld [vmem:[#allocation7 + $0x88] sm:$0xff]
    %v840 = vld [vmem:[#allocation7 + $0x90] sm:$0xff]
    %v841 = vld [vmem:[#allocation7 + $0x98] sm:$0xff]
    %v842 = vld [vmem:[#allocation7 + $0xa0] sm:$0xff]
    %v843 = vld [vmem:[#allocation7 + $0xa8] sm:$0xff]
    %v844 = vld [vmem:[#allocation7 + $0xb0] sm:$0xff]
    %v845 = vld [vmem:[#allocation7 + $0xb8] sm:$0xff]
    %v846 = vld [vmem:[#allocation7 + $0xc0] sm:$0xff]
    %v847 = vld [vmem:[#allocation7 + $0xc8] sm:$0xff]
    %v848 = vld [vmem:[#allocation7 + $0xd0] sm:$0xff]
    %v849 = vld [vmem:[#allocation7 + $0xd8] sm:$0xff]
    %v850 = vld [vmem:[#allocation7 + $0xe0] sm:$0xff]
    %v851 = vld [vmem:[#allocation7 + $0xe8] sm:$0xff]
    %v852 = vld [vmem:[#allocation7 + $0xf0] sm:$0xff]
    %v853 = vld [vmem:[#allocation7 + $0xf8] sm:$0xff]
    %v854 = vld [vmem:[#allocation7 + $0x100] sm:$0xff]
    %v855 = vld [vmem:[#allocation7 + $0x108] sm:$0xff]
    %v856 = vld [vmem:[#allocation7 + $0x110] sm:$0xff]
    %v857 = vld [vmem:[#allocation7 + $0x118] sm:$0xff]
    %v858 = vld [vmem:[#allocation7 + $0x120] sm:$0xff]
    %v859 = vld [vmem:[#allocation7 + $0x128] sm:$0xff]
    %v860 = vld [vmem:[#allocation7 + $0x130] sm:$0xff]
    %v861 = vld [vmem:[#allocation7 + $0x138] sm:$0xff]
    %v862 = vld [vmem:[#allocation7 + $0x140] sm:$0xff]
    %v863 = vld [vmem:[#allocation7 + $0x148] sm:$0xff]
    %v864 = vld [vmem:[#allocation7 + $0x150] sm:$0xff]
    %v865 = vld [vmem:[#allocation7 + $0x158] sm:$0xff]
    %v866 = vld [vmem:[#allocation7 + $0x160] sm:$0xff]
    %v867 = vld [vmem:[#allocation7 + $0x168] sm:$0xff]
    %v868 = vld [vmem:[#allocation7 + $0x170] sm:$0xff]
    %v869 = vld [vmem:[#allocation7 + $0x178] sm:$0xff]
    %v870 = vld [vmem:[#allocation7 + $0x180] sm:$0xff]
    %v871 = vld [vmem:[#allocation7 + $0x188] sm:$0xff]
    %v872 = vld [vmem:[#allocation7 + $0x190] sm:$0xff]
    %v873 = vld [vmem:[#allocation7 + $0x198] sm:$0xff]
    %v874 = vld [vmem:[#allocation7 + $0x1a0] sm:$0xff]
    %v875 = vld [vmem:[#allocation7 + $0x1a8] sm:$0xff]
    %v876 = vld [vmem:[#allocation7 + $0x1b0] sm:$0xff]
    %v877 = vld [vmem:[#allocation7 + $0x1b8] sm:$0xff]
    %v878 = vld [vmem:[#allocation7 + $0x1c0] sm:$0xff]
    %v879 = vld [vmem:[#allocation7 + $0x1c8] sm:$0xff]
    %v880 = vld [vmem:[#allocation7 + $0x1d0] sm:$0xff]
    %v881 = vld [vmem:[#allocation7 + $0x1d8] sm:$0xff]
    %v882 = vld [vmem:[#allocation7 + $0x1e0] sm:$0xff]
    %v883 = vld [vmem:[#allocation7 + $0x1e8] sm:$0xff]
    %v884 = vld [vmem:[#allocation7 + $0x1f0] sm:$0xff]
    %v885 = vld [vmem:[#allocation7 + $0x1f8] sm:$0xff]
    %v886 = vld [vmem:[%s4] sm:$0x1]
    %v888 = vlaneseq
    %v889 = vshrl.u32 %v888, 7
    %v890 = vsub.s32 0, %v889
    %v891 = vrot.slane %v886, %v890
    %893 = vmatprep.subr.mxu0 0.0
    %894 = vmatpush1.msra.mxu0 %v837
    %895 = vmatprep.subr.mxu0 0.0
    %896 = vmatpush1.msra.mxu0 %v836
    %897 = vmatprep.subr.mxu0 0.0
    %898 = vmatpush1.msra.mxu0 %v835
    %899 = vmatprep.subr.mxu0 0.0
    %900 = vmatpush1.msra.mxu0 %v834
    %901 = vmatprep.subr.mxu0 0.0
    %902 = vmatpush1.msra.mxu0 %v833
    %903 = vmatprep.subr.mxu0 0.0
    %904 = vmatpush1.msra.mxu0 %v832
    %905 = vmatprep.subr.mxu0 0.0
    %906 = vmatpush1.msra.mxu0 %v831
    %907 = vmatprep.subr.mxu0 0.0
    %908 = vmatpush1.msra.mxu0 %v830
    %909 = vmatprep.subr.mxu0 0.0
    %910 = vmatpush1.msra.mxu0 %v829
    %911 = vmatprep.subr.mxu0 0.0
    %912 = vmatpush1.msra.mxu0 %v828
    %913 = vmatprep.subr.mxu0 0.0
    %914 = vmatpush1.msra.mxu0 %v827
    %915 = vmatprep.subr.mxu0 0.0
    %916 = vmatpush1.msra.mxu0 %v826
    %917 = vmatprep.subr.mxu0 0.0
    %918 = vmatpush1.msra.mxu0 %v825
    %919 = vmatprep.subr.mxu0 0.0
    %920 = vmatpush1.msra.mxu0 %v824
    %921 = vmatprep.subr.mxu0 0.0
    %922 = vmatpush1.msra.mxu0 %v823
    %923 = vmatprep.subr.mxu0 0.0
    %924 = vmatpush1.msra.mxu0 %v822
    %925 = vmatprep.subr.mxu0 0.0
    %926 = vmatpush2.msra.mxu0 %v853
    %927 = vmatprep.subr.mxu0 0.0
    %928 = vmatpush2.msra.mxu0 %v852
    %929 = vmatprep.subr.mxu0 0.0
    %930 = vmatpush2.msra.mxu0 %v851
    %931 = vmatprep.subr.mxu0 0.0
    %932 = vmatpush2.msra.mxu0 %v850
    %933 = vmatprep.subr.mxu0 0.0
    %934 = vmatpush2.msra.mxu0 %v849
    %935 = vmatprep.subr.mxu0 0.0
    %936 = vmatpush2.msra.mxu0 %v848
    %937 = vmatprep.subr.mxu0 0.0
    %938 = vmatpush2.msra.mxu0 %v847
    %939 = vmatprep.subr.mxu0 0.0
    %940 = vmatpush2.msra.mxu0 %v846
    %941 = vmatprep.subr.mxu0 0.0
    %942 = vmatpush2.msra.mxu0 %v845
    %943 = vmatprep.subr.mxu0 0.0
    %944 = vmatpush2.msra.mxu0 %v844
    %945 = vmatprep.subr.mxu0 0.0
    %946 = vmatpush2.msra.mxu0 %v843
    %947 = vmatprep.subr.mxu0 0.0
    %948 = vmatpush2.msra.mxu0 %v842
    %949 = vmatprep.subr.mxu0 0.0
    %950 = vmatpush2.msra.mxu0 %v841
    %951 = vmatprep.subr.mxu0 0.0
    %952 = vmatpush2.msra.mxu0 %v840
    %953 = vmatprep.subr.mxu0 0.0
    %954 = vmatpush2.msra.mxu0 %v839
    %955 = vmatprep.subr.mxu0 0.0
    %956 = vmatpush2.msra.mxu0 %v838
    %957 = vmatprep.mubr.f32.mxu0 %v695
    %958 = vmatmul.mubr.f32.gmra.mxu0 %v694
    %v959 = vpop.f32.mrf.mxu0
    %v960 = vadd.f32 %v891, %v959
    %v961 = vpop.f32.mrf.mxu0
    %962 = vmatprep.mubr.f32.mxu0 %v699
    %963 = vmatmul.mubr.f32.gmra.mxu0 %v698
    %v964 = vpop.f32.mrf.mxu0
    %v965 = vadd.f32 %v891, %v964
    %v966 = vpop.f32.mrf.mxu0
    %967 = vmatprep.mubr.f32.mxu0 %v703
    %968 = vmatmul.mubr.f32.gmra.mxu0 %v702
    %v969 = vpop.f32.mrf.mxu0
    %v970 = vadd.f32 %v891, %v969
    %v971 = vpop.f32.mrf.mxu0
    %972 = vmatprep.mubr.f32.mxu0 %v707
    %973 = vmatmul.mubr.f32.gmra.mxu0 %v706
    %v974 = vpop.f32.mrf.mxu0
    %v975 = vadd.f32 %v891, %v974
    %v976 = vpop.f32.mrf.mxu0
    %977 = vmatprep.mubr.f32.mxu0 %v711
    %978 = vmatmul.mubr.f32.gmra.mxu0 %v710
    %v979 = vpop.f32.mrf.mxu0
    %v980 = vadd.f32 %v891, %v979
    %v981 = vpop.f32.mrf.mxu0
    %982 = vmatprep.mubr.f32.mxu0 %v715
    %983 = vmatmul.mubr.f32.gmra.mxu0 %v714
    %v984 = vpop.f32.mrf.mxu0
    %v985 = vadd.f32 %v891, %v984
    %v986 = vpop.f32.mrf.mxu0
    %987 = vmatprep.mubr.f32.mxu0 %v719
    %988 = vmatmul.mubr.f32.gmra.mxu0 %v718
    %v989 = vpop.f32.mrf.mxu0
    %v990 = vadd.f32 %v891, %v989
    %v991 = vpop.f32.mrf.mxu0
    %992 = vmatprep.mubr.f32.mxu0 %v723
    %993 = vmatmul.mubr.f32.gmra.mxu0 %v722
    %v994 = vpop.f32.mrf.mxu0
    %v995 = vadd.f32 %v891, %v994
    %v996 = vpop.f32.mrf.mxu0
    %997 = vmatprep.mubr.f32.mxu0 %v727
    %998 = vmatmul.mubr.f32.gmra.mxu0 %v726
    %v999 = vpop.f32.mrf.mxu0
    %v1000 = vadd.f32 %v891, %v999
    %v1001 = vpop.f32.mrf.mxu0
    %1002 = vmatprep.mubr.f32.mxu0 %v731
    %1003 = vmatmul.mubr.f32.gmra.mxu0 %v730
    %v1004 = vpop.f32.mrf.mxu0
    %v1005 = vadd.f32 %v891, %v1004
    %v1006 = vpop.f32.mrf.mxu0
    %1007 = vmatprep.mubr.f32.mxu0 %v735
    %1008 = vmatmul.mubr.f32.gmra.mxu0 %v734
    %v1009 = vpop.f32.mrf.mxu0
    %v1010 = vadd.f32 %v891, %v1009
    %v1011 = vpop.f32.mrf.mxu0
    %1012 = vmatprep.mubr.f32.mxu0 %v739
    %1013 = vmatmul.mubr.f32.gmra.mxu0 %v738
    %v1014 = vpop.f32.mrf.mxu0
    %v1015 = vadd.f32 %v891, %v1014
    %v1016 = vpop.f32.mrf.mxu0
    %1017 = vmatprep.mubr.f32.mxu0 %v743
    %1018 = vmatmul.mubr.f32.gmra.mxu0 %v742
    %v1019 = vpop.f32.mrf.mxu0
    %v1020 = vadd.f32 %v891, %v1019
    %v1021 = vpop.f32.mrf.mxu0
    %1022 = vmatprep.mubr.f32.mxu0 %v747
    %1023 = vmatmul.mubr.f32.gmra.mxu0 %v746
    %v1024 = vpop.f32.mrf.mxu0
    %v1025 = vadd.f32 %v891, %v1024
    %v1026 = vpop.f32.mrf.mxu0
    %1027 = vmatprep.mubr.f32.mxu0 %v751
    %1028 = vmatmul.mubr.f32.gmra.mxu0 %v750
    %v1029 = vpop.f32.mrf.mxu0
    %v1030 = vadd.f32 %v891, %v1029
    %v1031 = vpop.f32.mrf.mxu0
    %1032 = vmatprep.mubr.f32.mxu0 %v755
    %1033 = vmatmul.mubr.f32.gmra.mxu0 %v754
    %v1034 = vpop.f32.mrf.mxu0
    %v1035 = vadd.f32 %v891, %v1034
    %v1036 = vpop.f32.mrf.mxu0
    %1037 = vmatprep.mubr.f32.mxu0 %v759
    %1038 = vmatmul.mubr.f32.gmra.mxu0 %v758
    %v1039 = vpop.f32.mrf.mxu0
    %v1040 = vadd.f32 %v891, %v1039
    %v1041 = vpop.f32.mrf.mxu0
    %1042 = vmatprep.mubr.f32.mxu0 %v763
    %1043 = vmatmul.mubr.f32.gmra.mxu0 %v762
    %v1044 = vpop.f32.mrf.mxu0
    %v1045 = vadd.f32 %v891, %v1044
    %v1046 = vpop.f32.mrf.mxu0
    %1047 = vmatprep.mubr.f32.mxu0 %v767
    %1048 = vmatmul.mubr.f32.gmra.mxu0 %v766
    %v1049 = vpop.f32.mrf.mxu0
    %v1050 = vadd.f32 %v891, %v1049
    %v1051 = vpop.f32.mrf.mxu0
    %1052 = vmatprep.mubr.f32.mxu0 %v771
    %1053 = vmatmul.mubr.f32.gmra.mxu0 %v770
    %v1054 = vpop.f32.mrf.mxu0
    %v1055 = vadd.f32 %v891, %v1054
    %v1056 = vpop.f32.mrf.mxu0
    %1057 = vmatprep.mubr.f32.mxu0 %v775
    %1058 = vmatmul.mubr.f32.gmra.mxu0 %v774
    %v1059 = vpop.f32.mrf.mxu0
    %v1060 = vadd.f32 %v891, %v1059
    %v1061 = vpop.f32.mrf.mxu0
    %1062 = vmatprep.mubr.f32.mxu0 %v779
    %1063 = vmatmul.mubr.f32.gmra.mxu0 %v778
    %v1064 = vpop.f32.mrf.mxu0
    %v1065 = vadd.f32 %v891, %v1064
    %v1066 = vpop.f32.mrf.mxu0
    %1067 = vmatprep.mubr.f32.mxu0 %v783
    %1068 = vmatmul.mubr.f32.gmra.mxu0 %v782
    %v1069 = vpop.f32.mrf.mxu0
    %v1070 = vadd.f32 %v891, %v1069
    %v1071 = vpop.f32.mrf.mxu0
    %1072 = vmatprep.mubr.f32.mxu0 %v787
    %1073 = vmatmul.mubr.f32.gmra.mxu0 %v786
    %v1074 = vpop.f32.mrf.mxu0
    %v1075 = vadd.f32 %v891, %v1074
    %v1076 = vpop.f32.mrf.mxu0
    %1077 = vmatprep.mubr.f32.mxu0 %v791
    %1078 = vmatmul.mubr.f32.gmra.mxu0 %v790
    %v1079 = vpop.f32.mrf.mxu0
    %v1080 = vadd.f32 %v891, %v1079
    %v1081 = vpop.f32.mrf.mxu0
    %1082 = vmatprep.mubr.f32.mxu0 %v795
    %1083 = vmatmul.mubr.f32.gmra.mxu0 %v794
    %v1084 = vpop.f32.mrf.mxu0
    %v1085 = vadd.f32 %v891, %v1084
    %v1086 = vpop.f32.mrf.mxu0
    %1087 = vmatprep.mubr.f32.mxu0 %v799
    %1088 = vmatmul.mubr.f32.gmra.mxu0 %v798
    %v1089 = vpop.f32.mrf.mxu0
    %v1090 = vadd.f32 %v891, %v1089
    %v1091 = vpop.f32.mrf.mxu0
    %1092 = vmatprep.mubr.f32.mxu0 %v803
    %1093 = vmatmul.mubr.f32.gmra.mxu0 %v802
    %v1094 = vpop.f32.mrf.mxu0
    %v1095 = vadd.f32 %v891, %v1094
    %v1096 = vpop.f32.mrf.mxu0
    %1097 = vmatprep.mubr.f32.mxu0 %v807
    %1098 = vmatmul.mubr.f32.gmra.mxu0 %v806
    %v1099 = vpop.f32.mrf.mxu0
    %v1100 = vadd.f32 %v891, %v1099
    %v1101 = vpop.f32.mrf.mxu0
    %1102 = vmatprep.mubr.f32.mxu0 %v811
    %1103 = vmatmul.mubr.f32.gmra.mxu0 %v810
    %v1104 = vpop.f32.mrf.mxu0
    %v1105 = vadd.f32 %v891, %v1104
    %v1106 = vpop.f32.mrf.mxu0
    %1107 = vmatprep.mubr.f32.mxu0 %v815
    %1108 = vmatmul.mubr.f32.gmra.mxu0 %v814
    %v1109 = vpop.f32.mrf.mxu0
    %v1110 = vadd.f32 %v891, %v1109
    %v1111 = vpop.f32.mrf.mxu0
    %1112 = vmatprep.mubr.f32.mxu0 %v819
    %1113 = vmatmul.mubr.f32.gmra.mxu0 %v818
    %v1114 = vpop.f32.mrf.mxu0
    %v1115 = vadd.f32 %v891, %v1114
    %v1116 = vpop.f32.mrf.mxu0
    %1117 = vdwg.mxu0
    %1118 = vmatprep.subr.mxu0 0.0
    %1119 = vmatpush1.msra.mxu0 %v869
    %1120 = vmatprep.subr.mxu0 0.0
    %1121 = vmatpush1.msra.mxu0 %v868
    %1122 = vmatprep.subr.mxu0 0.0
    %1123 = vmatpush1.msra.mxu0 %v867
    %1124 = vmatprep.subr.mxu0 0.0
    %1125 = vmatpush1.msra.mxu0 %v866
    %1126 = vmatprep.subr.mxu0 0.0
    %1127 = vmatpush1.msra.mxu0 %v865
    %1128 = vmatprep.subr.mxu0 0.0
    %1129 = vmatpush1.msra.mxu0 %v864
    %1130 = vmatprep.subr.mxu0 0.0
    %1131 = vmatpush1.msra.mxu0 %v863
    %1132 = vmatprep.subr.mxu0 0.0
    %1133 = vmatpush1.msra.mxu0 %v862
    %1134 = vmatprep.subr.mxu0 0.0
    %1135 = vmatpush1.msra.mxu0 %v861
    %1136 = vmatprep.subr.mxu0 0.0
    %1137 = vmatpush1.msra.mxu0 %v860
    %1138 = vmatprep.subr.mxu0 0.0
    %1139 = vmatpush1.msra.mxu0 %v859
    %1140 = vmatprep.subr.mxu0 0.0
    %1141 = vmatpush1.msra.mxu0 %v858
    %1142 = vmatprep.subr.mxu0 0.0
    %1143 = vmatpush1.msra.mxu0 %v857
    %1144 = vmatprep.subr.mxu0 0.0
    %1145 = vmatpush1.msra.mxu0 %v856
    %1146 = vmatprep.subr.mxu0 0.0
    %1147 = vmatpush1.msra.mxu0 %v855
    %1148 = vmatprep.subr.mxu0 0.0
    %1149 = vmatpush1.msra.mxu0 %v854
    %1150 = vmatprep.subr.mxu0 0.0
    %1151 = vmatpush2.msra.mxu0 %v885
    %1152 = vmatprep.subr.mxu0 0.0
    %1153 = vmatpush2.msra.mxu0 %v884
    %1154 = vmatprep.subr.mxu0 0.0
    %1155 = vmatpush2.msra.mxu0 %v883
    %1156 = vmatprep.subr.mxu0 0.0
    %1157 = vmatpush2.msra.mxu0 %v882
    %1158 = vmatprep.subr.mxu0 0.0
    %1159 = vmatpush2.msra.mxu0 %v881
    %1160 = vmatprep.subr.mxu0 0.0
    %1161 = vmatpush2.msra.mxu0 %v880
    %1162 = vmatprep.subr.mxu0 0.0
    %1163 = vmatpush2.msra.mxu0 %v879
    %1164 = vmatprep.subr.mxu0 0.0
    %1165 = vmatpush2.msra.mxu0 %v878
    %1166 = vmatprep.subr.mxu0 0.0
    %1167 = vmatpush2.msra.mxu0 %v877
    %1168 = vmatprep.subr.mxu0 0.0
    %1169 = vmatpush2.msra.mxu0 %v876
    %1170 = vmatprep.subr.mxu0 0.0
    %1171 = vmatpush2.msra.mxu0 %v875
    %1172 = vmatprep.subr.mxu0 0.0
    %1173 = vmatpush2.msra.mxu0 %v874
    %1174 = vmatprep.subr.mxu0 0.0
    %1175 = vmatpush2.msra.mxu0 %v873
    %1176 = vmatprep.subr.mxu0 0.0
    %1177 = vmatpush2.msra.mxu0 %v872
    %1178 = vmatprep.subr.mxu0 0.0
    %1179 = vmatpush2.msra.mxu0 %v871
    %1180 = vmatprep.subr.mxu0 0.0
    %1181 = vmatpush2.msra.mxu0 %v870
    %1182 = vmatprep.mubr.f32.mxu0 %v697
    %1183 = vmatmul.mubr.f32.gmra.mxu0 %v696
    %v1184 = vpop.f32.mrf.mxu0
    %v1185 = vadd.f32 %v960, %v1184
    %v1186 = vpop.f32.mrf.mxu0
    %1187 = vmatprep.mubr.f32.mxu0 %v701
    %1188 = vmatmul.mubr.f32.gmra.mxu0 %v700
    %v1189 = vpop.f32.mrf.mxu0
    %v1190 = vadd.f32 %v965, %v1189
    %v1191 = vpop.f32.mrf.mxu0
    %1192 = vmatprep.mubr.f32.mxu0 %v705
    %1193 = vmatmul.mubr.f32.gmra.mxu0 %v704
    %v1194 = vpop.f32.mrf.mxu0
    %v1195 = vadd.f32 %v970, %v1194
    %v1196 = vpop.f32.mrf.mxu0
    %1197 = vmatprep.mubr.f32.mxu0 %v709
    %1198 = vmatmul.mubr.f32.gmra.mxu0 %v708
    %v1199 = vpop.f32.mrf.mxu0
    %v1200 = vadd.f32 %v975, %v1199
    %v1201 = vpop.f32.mrf.mxu0
    %1202 = vmatprep.mubr.f32.mxu0 %v713
    %1203 = vmatmul.mubr.f32.gmra.mxu0 %v712
    %v1204 = vpop.f32.mrf.mxu0
    %v1205 = vadd.f32 %v980, %v1204
    %v1206 = vpop.f32.mrf.mxu0
    %1207 = vmatprep.mubr.f32.mxu0 %v717
    %1208 = vmatmul.mubr.f32.gmra.mxu0 %v716
    %v1209 = vpop.f32.mrf.mxu0
    %v1210 = vadd.f32 %v985, %v1209
    %v1211 = vpop.f32.mrf.mxu0
    %1212 = vmatprep.mubr.f32.mxu0 %v721
    %1213 = vmatmul.mubr.f32.gmra.mxu0 %v720
    %v1214 = vpop.f32.mrf.mxu0
    %v1215 = vadd.f32 %v990, %v1214
    %v1216 = vpop.f32.mrf.mxu0
    %1217 = vmatprep.mubr.f32.mxu0 %v725
    %1218 = vmatmul.mubr.f32.gmra.mxu0 %v724
    %v1219 = vpop.f32.mrf.mxu0
    %v1220 = vadd.f32 %v995, %v1219
    %v1221 = vpop.f32.mrf.mxu0
    %1222 = vmatprep.mubr.f32.mxu0 %v729
    %1223 = vmatmul.mubr.f32.gmra.mxu0 %v728
    %v1224 = vpop.f32.mrf.mxu0
    %v1225 = vadd.f32 %v1000, %v1224
    %v1226 = vpop.f32.mrf.mxu0
    %1227 = vmatprep.mubr.f32.mxu0 %v733
    %1228 = vmatmul.mubr.f32.gmra.mxu0 %v732
    %v1229 = vpop.f32.mrf.mxu0
    %v1230 = vadd.f32 %v1005, %v1229
    %v1231 = vpop.f32.mrf.mxu0
    %1232 = vmatprep.mubr.f32.mxu0 %v737
    %1233 = vmatmul.mubr.f32.gmra.mxu0 %v736
    %v1234 = vpop.f32.mrf.mxu0
    %v1235 = vadd.f32 %v1010, %v1234
    %v1236 = vpop.f32.mrf.mxu0
    %1237 = vmatprep.mubr.f32.mxu0 %v741
    %1238 = vmatmul.mubr.f32.gmra.mxu0 %v740
    %v1239 = vpop.f32.mrf.mxu0
    %v1240 = vadd.f32 %v1015, %v1239
    %v1241 = vpop.f32.mrf.mxu0
    %1242 = vmatprep.mubr.f32.mxu0 %v745
    %1243 = vmatmul.mubr.f32.gmra.mxu0 %v744
    %v1244 = vpop.f32.mrf.mxu0
    %v1245 = vadd.f32 %v1020, %v1244
    %v1246 = vpop.f32.mrf.mxu0
    %1247 = vmatprep.mubr.f32.mxu0 %v749
    %1248 = vmatmul.mubr.f32.gmra.mxu0 %v748
    %v1249 = vpop.f32.mrf.mxu0
    %v1250 = vadd.f32 %v1025, %v1249
    %v1251 = vpop.f32.mrf.mxu0
    %1252 = vmatprep.mubr.f32.mxu0 %v753
    %1253 = vmatmul.mubr.f32.gmra.mxu0 %v752
    %v1254 = vpop.f32.mrf.mxu0
    %v1255 = vadd.f32 %v1030, %v1254
    %v1256 = vpop.f32.mrf.mxu0
    %1257 = vmatprep.mubr.f32.mxu0 %v757
    %1258 = vmatmul.mubr.f32.gmra.mxu0 %v756
    %v1259 = vpop.f32.mrf.mxu0
    %v1260 = vadd.f32 %v1035, %v1259
    %v1261 = vpop.f32.mrf.mxu0
    %1262 = vmatprep.mubr.f32.mxu0 %v761
    %1263 = vmatmul.mubr.f32.gmra.mxu0 %v760
    %v1264 = vpop.f32.mrf.mxu0
    %v1265 = vadd.f32 %v1040, %v1264
    %v1266 = vpop.f32.mrf.mxu0
    %1267 = vmatprep.mubr.f32.mxu0 %v765
    %1268 = vmatmul.mubr.f32.gmra.mxu0 %v764
    %v1269 = vpop.f32.mrf.mxu0
    %v1270 = vadd.f32 %v1045, %v1269
    %v1271 = vpop.f32.mrf.mxu0
    %1272 = vmatprep.mubr.f32.mxu0 %v769
    %1273 = vmatmul.mubr.f32.gmra.mxu0 %v768
    %v1274 = vpop.f32.mrf.mxu0
    %v1275 = vadd.f32 %v1050, %v1274
    %v1276 = vpop.f32.mrf.mxu0
    %1277 = vmatprep.mubr.f32.mxu0 %v773
    %1278 = vmatmul.mubr.f32.gmra.mxu0 %v772
    %v1279 = vpop.f32.mrf.mxu0
    %v1280 = vadd.f32 %v1055, %v1279
    %v1281 = vpop.f32.mrf.mxu0
    %1282 = vmatprep.mubr.f32.mxu0 %v777
    %1283 = vmatmul.mubr.f32.gmra.mxu0 %v776
    %v1284 = vpop.f32.mrf.mxu0
    %v1285 = vadd.f32 %v1060, %v1284
    %v1286 = vpop.f32.mrf.mxu0
    %1287 = vmatprep.mubr.f32.mxu0 %v781
    %1288 = vmatmul.mubr.f32.gmra.mxu0 %v780
    %v1289 = vpop.f32.mrf.mxu0
    %v1290 = vadd.f32 %v1065, %v1289
    %v1291 = vpop.f32.mrf.mxu0
    %1292 = vmatprep.mubr.f32.mxu0 %v785
    %1293 = vmatmul.mubr.f32.gmra.mxu0 %v784
    %v1294 = vpop.f32.mrf.mxu0
    %v1295 = vadd.f32 %v1070, %v1294
    %v1296 = vpop.f32.mrf.mxu0
    %1297 = vmatprep.mubr.f32.mxu0 %v789
    %1298 = vmatmul.mubr.f32.gmra.mxu0 %v788
    %v1299 = vpop.f32.mrf.mxu0
    %v1300 = vadd.f32 %v1075, %v1299
    %v1301 = vpop.f32.mrf.mxu0
    %1302 = vmatprep.mubr.f32.mxu0 %v793
    %1303 = vmatmul.mubr.f32.gmra.mxu0 %v792
    %v1304 = vpop.f32.mrf.mxu0
    %v1305 = vadd.f32 %v1080, %v1304
    %v1306 = vpop.f32.mrf.mxu0
    %1307 = vmatprep.mubr.f32.mxu0 %v797
    %1308 = vmatmul.mubr.f32.gmra.mxu0 %v796
    %v1309 = vpop.f32.mrf.mxu0
    %v1310 = vadd.f32 %v1085, %v1309
    %v1311 = vpop.f32.mrf.mxu0
    %1312 = vmatprep.mubr.f32.mxu0 %v801
    %1313 = vmatmul.mubr.f32.gmra.mxu0 %v800
    %v1314 = vpop.f32.mrf.mxu0
    %v1315 = vadd.f32 %v1090, %v1314
    %v1316 = vpop.f32.mrf.mxu0
    %1317 = vmatprep.mubr.f32.mxu0 %v805
    %1318 = vmatmul.mubr.f32.gmra.mxu0 %v804
    %v1319 = vpop.f32.mrf.mxu0
    %v1320 = vadd.f32 %v1095, %v1319
    %v1321 = vpop.f32.mrf.mxu0
    %1322 = vmatprep.mubr.f32.mxu0 %v809
    %1323 = vmatmul.mubr.f32.gmra.mxu0 %v808
    %v1324 = vpop.f32.mrf.mxu0
    %v1325 = vadd.f32 %v1100, %v1324
    %v1326 = vpop.f32.mrf.mxu0
    %1327 = vmatprep.mubr.f32.mxu0 %v813
    %1328 = vmatmul.mubr.f32.gmra.mxu0 %v812
    %v1329 = vpop.f32.mrf.mxu0
    %v1330 = vadd.f32 %v1105, %v1329
    %v1331 = vpop.f32.mrf.mxu0
    %1332 = vmatprep.mubr.f32.mxu0 %v817
    %1333 = vmatmul.mubr.f32.gmra.mxu0 %v816
    %v1334 = vpop.f32.mrf.mxu0
    %v1335 = vadd.f32 %v1110, %v1334
    %v1336 = vpop.f32.mrf.mxu0
    %1337 = vmatprep.mubr.f32.mxu0 %v821
    %1338 = vmatmul.mubr.f32.gmra.mxu0 %v820
    %v1339 = vpop.f32.mrf.mxu0
    %v1340 = vadd.f32 %v1115, %v1339
    %v1341 = vpop.f32.mrf.mxu0
    %1342 = vdwg.mxu0
    %1343 = vst [vmem:[#allocation8] sm:$0xff] %v1185
    %1344 = vst [vmem:[#allocation8 + $0x8] sm:$0xff] %v1190
    %1345 = vst [vmem:[#allocation8 + $0x10] sm:$0xff] %v1195
    %1346 = vst [vmem:[#allocation8 + $0x18] sm:$0xff] %v1200
    %1347 = vst [vmem:[#allocation8 + $0x20] sm:$0xff] %v1205
    %1348 = vst [vmem:[#allocation8 + $0x28] sm:$0xff] %v1210
    %1349 = vst [vmem:[#allocation8 + $0x30] sm:$0xff] %v1215
    %1350 = vst [vmem:[#allocation8 + $0x38] sm:$0xff] %v1220
    %1351 = vst [vmem:[#allocation8 + $0x40] sm:$0xff] %v1225
    %1352 = vst [vmem:[#allocation8 + $0x48] sm:$0xff] %v1230
    %1353 = vst [vmem:[#allocation8 + $0x50] sm:$0xff] %v1235
    %1354 = vst [vmem:[#allocation8 + $0x58] sm:$0xff] %v1240
    %1355 = vst [vmem:[#allocation8 + $0x60] sm:$0xff] %v1245
    %1356 = vst [vmem:[#allocation8 + $0x68] sm:$0xff] %v1250
    %1357 = vst [vmem:[#allocation8 + $0x70] sm:$0xff] %v1255
    %1358 = vst [vmem:[#allocation8 + $0x78] sm:$0xff] %v1260
    %1359 = vst [vmem:[#allocation8 + $0x80] sm:$0xff] %v1265
    %1360 = vst [vmem:[#allocation8 + $0x88] sm:$0xff] %v1270
    %1361 = vst [vmem:[#allocation8 + $0x90] sm:$0xff] %v1275
    %1362 = vst [vmem:[#allocation8 + $0x98] sm:$0xff] %v1280
    %1363 = vst [vmem:[#allocation8 + $0xa0] sm:$0xff] %v1285
    %1364 = vst [vmem:[#allocation8 + $0xa8] sm:$0xff] %v1290
    %1365 = vst [vmem:[#allocation8 + $0xb0] sm:$0xff] %v1295
    %1366 = vst [vmem:[#allocation8 + $0xb8] sm:$0xff] %v1300
    %1367 = vst [vmem:[#allocation8 + $0xc0] sm:$0xff] %v1305
    %1368 = vst [vmem:[#allocation8 + $0xc8] sm:$0xff] %v1310
    %1369 = vst [vmem:[#allocation8 + $0xd0] sm:$0xff] %v1315
    %1370 = vst [vmem:[#allocation8 + $0xd8] sm:$0xff] %v1320
    %1371 = vst [vmem:[#allocation8 + $0xe0] sm:$0xff] %v1325
    %1372 = vst [vmem:[#allocation8 + $0xe8] sm:$0xff] %v1330
    %1373 = vst [vmem:[#allocation8 + $0xf0] sm:$0xff] %v1335
    %1374 = vst [vmem:[#allocation8 + $0xf8] sm:$0xff] %v1340
    // Predicated region
    $region34: #{position_wise_ffn.1} parent=1 // pred_check
      _
    $region35: #{position_wise_ffn.1} parent=1 // pred_check_branch
      %1376 = sbr.rel (0) target = $region37
    $region36: #{position_wise_ffn.1} parent=1 // pred_region
      %s1378 = ssub.s32 4096, 4096
      %1379 = vsyncadd [#allocation4], %s1378
      %s1380 = sshll.u32 [#allocation8], 4
      %s1381 = int_to_ptr.vmem [resolvable:$true] %s1380
      %1386 = dma.vmem_to_hbm [thread:$0]  %s1381, 4096, %s5, [#allocation4], 128, 128, 8
    $region37: #{position_wise_ffn.1} parent=1 // pred_fallthru
      _
    // Predicated region
    $region38: #{position_wise_ffn.1} parent=1 // pred_check
      _
    $region39: #{position_wise_ffn.1} parent=1 // pred_check_branch
      %1388 = sbr.rel (0) target = $region41
    $region40: #{position_wise_ffn.1} parent=1 // pred_region
      %1389 = dma.done [#allocation4], 4096
    $region41: #{position_wise_ffn.1} parent=1 // pred_fallthru
      _
    %1390 = vsyncpa [#allocation3], 1
    %1391 = vsyncpa [#allocation6], 1
    %1392 = vsyncpa [#allocation4], 1

</llo_original>
